<compile_context>
chip_gen: v5e
topology: v5e:2x2
jax: 0.10.0
libtpu: 0.0.40
codegen_flags: <defaults>
</compile_context>

<pallas_src>
from functools import partial

import jax
import jax.numpy as jnp
from jax.experimental import pallas as pl
from jax.experimental.pallas import tpu as pltpu

LANE = 128


def _round_up(x, m):
    return (x + m - 1) // m * m


def _num_batch_tiles(B, S):
    # Largest batch split such that each tile's row count (bt*S) stays 8-aligned.
    for nbt in range(B, 0, -1):
        if B % nbt == 0 and ((B // nbt) * S) % 8 == 0:
            return nbt
    return 1


# ---------------------------------------------------------------------------
# Fused encoder kernel (embedding LN + all layers + pooler in one pallas_call)
# ---------------------------------------------------------------------------

def _layer_norm_padded(x, gamma, beta, *, H, Hp, eps):
    """LayerNorm over the real H lanes of a lane-padded (rows, Hp) tile.

    Requires padded lanes of `x` to be exactly zero and gamma/beta zero-padded,
    so the output stays zero on padded lanes.
    """
    mu = jnp.sum(x, axis=-1, keepdims=True) * (1.0 / H)
    xc = x - mu
    ss = jnp.sum(xc * xc, axis=-1, keepdims=True)
    var = (ss - (Hp - H) * (mu * mu)) * (1.0 / H)   # remove padded-lane (0-mu)^2 terms
    return xc * jax.lax.rsqrt(var + eps) * gamma + beta


def _encoder_kernel(emb_ref, mask_ref, const_ref,
                    wqkv_ref, wo_ref, w1_ref, w2_ref, vec_ref, poolw_ref,
                    hidden_ref, pooled_ref,
                    x_scr, ctx_scr,
                    *, BT, S, nH, dH, H, Hp, Fp, eps, scale):
    layer = pl.program_id(1)
    rows = BT * S

    # First layer of each batch tile: embedding LayerNorm into the VMEM carry,
    # and zero the ctx tile once so padded-head lanes stay exactly zero.
    @pl.when(layer == 0)
    def _():
        x_scr[...] = _layer_norm_padded(emb_ref[...], const_ref[0:1, :],
                                        const_ref[1:2, :], H=H, Hp=Hp, eps=eps)
        ctx_scr[...] = jnp.zeros_like(ctx_scr)

    x = x_scr[...]                                   # (rows, Hp) f32, VMEM-resident
    xb = x.astype(jnp.bfloat16)

    # Packed per-layer small vectors: one DMA, sliced here (f32).
    vec = vec_ref[...]                               # (8, 3*Hp)
    bqkv = vec[0:1, :]
    bo, ln1g, ln1b = vec[1:2, :Hp], vec[2:3, :Hp], vec[3:4, :Hp]
    b1 = vec[4:5, :Fp]
    b2, ln2g, ln2b = vec[5:6, :Hp], vec[6:7, :Hp], vec[7:8, :Hp]

    # Fused QKV projection: one bf16 MXU matmul + f32 bias epilogue.
    qkv = jnp.dot(xb, wqkv_ref[...], preferred_element_type=jnp.float32) + bqkv

    mask_add = mask_ref[...]                         # (BT, 1, S) additive, precomputed

    # Attention per head (scores / exact softmax / context); all head contexts
    # land in one lane-dense ctx tile so the output projection below is a single
    # (rows, Hp) @ (Hp, Hp) matmul instead of nH K=dH matmuls.
    # TODO(synk): fold the head loop into one head-batched einsum (2 batch dims)
    # once that dot_general lowering is validated on the target Mosaic version.
    for h in range(nH):
        q = qkv[:, h * dH:(h + 1) * dH].reshape(BT, S, dH).astype(jnp.bfloat16)
        k = qkv[:, Hp + h * dH:Hp + (h + 1) * dH].reshape(BT, S, dH).astype(jnp.bfloat16)
        v = qkv[:, 2 * Hp + h * dH:2 * Hp + (h + 1) * dH].reshape(BT, S, dH).astype(jnp.bfloat16)

        s = jnp.einsum("bqd,bkd->bqk", q, k,
                       preferred_element_type=jnp.float32) * scale + mask_add
        s = s - jnp.max(s, axis=-1, keepdims=True)
        p = jnp.exp(s)
        p = p / jnp.sum(p, axis=-1, keepdims=True)   # exact softmax (no approx recip)

        ctx = jnp.einsum("bqk,bkd->bqd", p.astype(jnp.bfloat16), v,
                         preferred_element_type=jnp.float32)
        ctx_scr[:, h * dH:(h + 1) * dH] = ctx.reshape(rows, dH).astype(jnp.bfloat16)

    # Single fused output projection + residual + LayerNorm epilogue.
    attn = jnp.dot(ctx_scr[...], wo_ref[...], preferred_element_type=jnp.float32) + bo
    x = _layer_norm_padded(attn + x, ln1g, ln1b, H=H, Hp=Hp, eps=eps)

    # FFN (bf16 matmuls, f32 bias+GELU epilogue), residual + LayerNorm.
    f = jnp.dot(x.astype(jnp.bfloat16), w1_ref[...], preferred_element_type=jnp.float32) + b1
    f = jax.nn.gelu(f)   # TODO(synk): HF BERT uses erf-GELU; tanh approx kept (matches ref)
    f = jnp.dot(f.astype(jnp.bfloat16), w2_ref[...], preferred_element_type=jnp.float32) + b2
    x = _layer_norm_padded(f + x, ln2g, ln2b, H=H, Hp=Hp, eps=eps)

    x_scr[...] = x                                   # carry to the next layer

    # Last layer: write hidden states + fused tanh pooler (full-row matmul, then
    # pick the CLS row of each sequence).
    @pl.when(layer == pl.num_programs(1) - 1)
    def _():
        hidden_ref[...] = x
        pooled_all = jnp.tanh(
            jnp.dot(x.astype(jnp.bfloat16), poolw_ref[...],
                    preferred_element_type=jnp.float32) + const_ref[2:3, :])
        pooled_ref[...] = pooled_all.reshape(BT, S, Hp)[:, 0:1, :]


# ---------------------------------------------------------------------------
# Model (BERT-like encoder standing in for the HF AutoModel)
# ---------------------------------------------------------------------------

class Config:
    vocab_size = 64
    hidden = 32
    num_heads = 2
    head_dim = 16
    ffn = 64
    num_layers = 2
    max_pos = 16
    type_vocab = 2


def init_params(cfg, key):
    def nrm(key, shape, scale=0.02):
        return scale * jax.random.normal(key, shape, dtype=jnp.float32)

    keys = iter(jax.random.split(key, 64))
    p = {
        "tok_emb": nrm(next(keys), (cfg.vocab_size, cfg.hidden)),
        "pos_emb": nrm(next(keys), (cfg.max_pos, cfg.hidden)),
        "typ_emb": nrm(next(keys), (cfg.type_vocab, cfg.hidden)),
        "emb_ln_g": jnp.ones((cfg.hidden,), jnp.float32),
        "emb_ln_b": jnp.zeros((cfg.hidden,), jnp.float32),
        "pool_w": nrm(next(keys), (cfg.hidden, cfg.hidden)),
        "pool_b": jnp.zeros((cfg.hidden,), jnp.float32),
        "layers": [],
    }
    for _ in range(cfg.num_layers):
        layer = {
            "wq": nrm(next(keys), (cfg.hidden, cfg.hidden)),
            "bq": jnp.zeros((cfg.hidden,), jnp.float32),
            "wk": nrm(next(keys), (cfg.hidden, cfg.hidden)),
            "bk": jnp.zeros((cfg.hidden,), jnp.float32),
            "wv": nrm(next(keys), (cfg.hidden, cfg.hidden)),
            "bv": jnp.zeros((cfg.hidden,), jnp.float32),
            "wo": nrm(next(keys), (cfg.hidden, cfg.hidden)),
            "bo": jnp.zeros((cfg.hidden,), jnp.float32),
            "ln1_g": jnp.ones((cfg.hidden,), jnp.float32),
            "ln1_b": jnp.zeros((cfg.hidden,), jnp.float32),
            "w1": nrm(next(keys), (cfg.hidden, cfg.ffn)),
            "b1": jnp.zeros((cfg.ffn,), jnp.float32),
            "w2": nrm(next(keys), (cfg.ffn, cfg.hidden)),
            "b2": jnp.zeros((cfg.hidden,), jnp.float32),
            "ln2_g": jnp.ones((cfg.hidden,), jnp.float32),
            "ln2_b": jnp.zeros((cfg.hidden,), jnp.float32),
        }
        p["layers"].append(layer)
    return p


def pack_params(params, cfg):
    """Pack/pad/bf16-cast weights ONCE (outside forward) into kernel layout."""
    H, F = cfg.hidden, cfg.ffn
    Hp, Fp = _round_up(H, LANE), _round_up(F, LANE)
    W3 = 3 * Hp

    def padw(w, r, c):
        return jnp.zeros((r, c), jnp.float32).at[:w.shape[0], :w.shape[1]].set(w)

    def padv(v, n):
        return jnp.zeros((n,), jnp.float32).at[:v.shape[0]].set(v)

    wqkv, wo, w1, w2, vecs = [], [], [], [], []
    for lyr in params["layers"]:
        wqkv.append(jnp.concatenate(
            [padw(lyr["wq"], Hp, Hp), padw(lyr["wk"], Hp, Hp), padw(lyr["wv"], Hp, Hp)],
            axis=-1))
        wo.append(padw(lyr["wo"], Hp, Hp))
        w1.append(padw(lyr["w1"], Hp, Fp))
        w2.append(padw(lyr["w2"], Fp, Hp))
        bqkv = jnp.concatenate(
            [padv(lyr["bq"], Hp), padv(lyr["bk"], Hp), padv(lyr["bv"], Hp)])
        vecs.append(jnp.stack([
            bqkv,
            padv(lyr["bo"], W3), padv(lyr["ln1_g"], W3), padv(lyr["ln1_b"], W3),
            padv(lyr["b1"], W3), padv(lyr["b2"], W3),
            padv(lyr["ln2_g"], W3), padv(lyr["ln2_b"], W3)], axis=0))

    return {
        "Hp": Hp, "Fp": Fp,
        "wqkv": jnp.stack(wqkv).astype(jnp.bfloat16),      # (L, Hp, 3Hp) bf16
        "wo": jnp.stack(wo).astype(jnp.bfloat16),          # (L, Hp, Hp)  bf16
        "w1": jnp.stack(w1).astype(jnp.bfloat16),          # (L, Hp, Fp)  bf16
        "w2": jnp.stack(w2).astype(jnp.bfloat16),          # (L, Fp, Hp)  bf16
        "vecs": jnp.stack(vecs),                           # (L, 8, 3Hp)  f32
        "poolw": padw(params["pool_w"], Hp, Hp).astype(jnp.bfloat16),
        "consts": jnp.stack([padv(params["emb_ln_g"], Hp),
                             padv(params["emb_ln_b"], Hp),
                             padv(params["pool_b"], Hp)], axis=0),   # (3, Hp) f32
        "tok_emb": params["tok_emb"],
        "pos_emb": params["pos_emb"],
        "typ_emb": params["typ_emb"],
    }


def forward(packed, tokens, attention_mask, cfg=Config):
    """Equivalent of GenericHuggingfaceWrapper.forward(tokens):
    returns (last_hidden_state [B,S,H], pooler_output [B,H])."""
    B, S = tokens.shape
    H, nH, dH, L = cfg.hidden, cfg.num_heads, cfg.head_dim, cfg.num_layers
    Hp, Fp = packed["Hp"], packed["Fp"]

    # Embedding gather (glue, plain JAX), padded lane-dense to Hp.
    emb = (jnp.take(packed["tok_emb"], tokens, axis=0)
           + packed["pos_emb"][jnp.arange(S)][None, :, :]
           + packed["typ_emb"][0][None, None, :])                        # (B,S,H)
    emb_p = jnp.zeros((B, S, Hp), jnp.float32).at[:, :, :H].set(emb).reshape(B * S, Hp)

    # Additive attention mask precomputed once (layer-invariant, hoisted out of
    # the kernel's layer loop).  Assumes a 0/1 mask.
    neg_mask = ((1.0 - attention_mask.astype(jnp.float32)) * -1e9).reshape(B, 1, S)

    NBT = _num_batch_tiles(B, S)            # parallel batch tiles (2 TCs on v7x)
    BT = B // NBT
    rows = BT * S

    scale = 1.0 / float(dH) ** 0.5
    kernel = partial(_encoder_kernel, BT=BT, S=S, nH=nH, dH=dH,
                     H=H, Hp=Hp, Fp=Fp, eps=1e-12, scale=scale)

    hidden_p, pooled_p = pl.pallas_call(
        kernel,
        out_shape=(jax.ShapeDtypeStruct((B * S, Hp), jnp.float32),
                   jax.ShapeDtypeStruct((B, 1, Hp), jnp.float32)),
        grid=(NBT, L),
        in_specs=[
            pl.BlockSpec((rows, Hp), lambda b, l: (b, 0)),              # padded embeddings
            pl.BlockSpec((BT, 1, S), lambda b, l: (b, 0, 0)),           # additive mask
            pl.BlockSpec((3, Hp), lambda b, l: (0, 0)),                 # emb LN g/b + pool bias
            pl.BlockSpec((None, Hp, 3 * Hp), lambda b, l: (l, 0, 0)),   # fused wqkv (bf16)
            pl.BlockSpec((None, Hp, Hp), lambda b, l: (l, 0, 0)),       # wo (bf16)
            pl.BlockSpec((None, Hp, Fp), lambda b, l: (l, 0, 0)),       # w1 (bf16)
            pl.BlockSpec((None, Fp, Hp), lambda b, l: (l, 0, 0)),       # w2 (bf16)
            pl.BlockSpec((None, 8, 3 * Hp), lambda b, l: (l, 0, 0)),    # packed per-layer vecs
            pl.BlockSpec((Hp, Hp), lambda b, l: (0, 0)),                # pooler weight (bf16)
        ],
        out_specs=(pl.BlockSpec((rows, Hp), lambda b, l: (b, 0)),
                   pl.BlockSpec((BT, 1, Hp), lambda b, l: (b, 0, 0))),
        scratch_shapes=[pltpu.VMEM((rows, Hp), jnp.float32),            # layer-carried x
                        pltpu.VMEM((rows, Hp), jnp.bfloat16)],          # concat'd head ctx
        compiler_params=pltpu.CompilerParams(
            dimension_semantics=("parallel", "arbitrary"),
            vmem_limit_bytes=32 * 1024 * 1024),
    )(emb_p, neg_mask, packed["consts"], packed["wqkv"], packed["wo"],
      packed["w1"], packed["w2"], packed["vecs"], packed["poolw"])

    last_hidden = hidden_p[:, :H].reshape(B, S, H)
    pooled = pooled_p.reshape(B, Hp)[:, :H]
    return last_hidden, pooled


# ---------------------------------------------------------------------------
# Pure-JAX reference (for a correctness check)
# ---------------------------------------------------------------------------

def _ln_ref(x, g, b, eps=1e-12):
    mu = jnp.mean(x, axis=-1, keepdims=True)
    var = jnp.mean((x - mu) ** 2, axis=-1, keepdims=True)
    return (x - mu) * jax.lax.rsqrt(var + eps) * g + b


def forward_ref(params, tokens, attention_mask, cfg=Config):
    B, S = tokens.shape
    H, nH, dH = cfg.hidden, cfg.num_heads, cfg.head_dim
    emb = (jnp.take(params["tok_emb"], tokens, axis=0)
           + params["pos_emb"][jnp.arange(S)][None]
           + params["typ_emb"][0][None, None, :])
    x = _ln_ref(emb, params["emb_ln_g"], params["emb_ln_b"])
    mask_add = (1.0 - attention_mask.astype(jnp.float32)) * -1e9
    mask_add = mask_add[:, None, None, :]
    scale = 1.0 / float(dH) ** 0.5
    for lyr in params["layers"]:
        def proj(t, w, b):
            return (t @ w + b).reshape(B, S, nH, dH).transpose(0, 2, 1, 3)
        q, k, v = (proj(x, lyr["wq"], lyr["bq"]),
                   proj(x, lyr["wk"], lyr["bk"]),
                   proj(x, lyr["wv"], lyr["bv"]))
        s = jnp.einsum("bhqd,bhkd->bhqk", q, k) * scale + mask_add
        p = jax.nn.softmax(s, axis=-1)
        ctx = jnp.einsum("bhqk,bhkd->bhqd", p, v).transpose(0, 2, 1, 3)
        ctx = ctx.reshape(B, S, H)
        x = _ln_ref(ctx @ lyr["wo"] + lyr["bo"] + x, lyr["ln1_g"], lyr["ln1_b"])
        f = jax.nn.gelu(x @ lyr["w1"] + lyr["b1"]) @ lyr["w2"] + lyr["b2"]
        x = _ln_ref(f + x, lyr["ln2_g"], lyr["ln2_b"])
    pooled = jnp.tanh(x[:, 0, :] @ params["pool_w"] + params["pool_b"])
    return x, pooled


# ---------------------------------------------------------------------------

if __name__ == "__main__":
    cfg = Config
    B, S = 2, 8

    key = jax.random.PRNGKey(0)
    k_par, k_tok = jax.random.split(key)
    params = init_params(cfg, k_par)
    packed = pack_params(params, cfg)      # packed / padded / bf16 once, outside forward
    tokens = jax.random.randint(k_tok, (B, S), 0, cfg.vocab_size, dtype=jnp.int32)
    attention_mask = jnp.ones((B, S), dtype=jnp.int32).at[1, 6:].set(0)  # some padding

    last_hidden, pooled = forward(packed, tokens, attention_mask)
    jax.block_until_ready((last_hidden, pooled))

    ref_hidden, ref_pooled = forward_ref(params, tokens, attention_mask)
    assert last_hidden.shape == (B, S, cfg.hidden)
    assert pooled.shape == (B, cfg.hidden)
    # bf16 MXU operands vs an f32 reference -> relaxed tolerance.
    assert jnp.allclose(last_hidden, ref_hidden, atol=2e-2, rtol=2e-2), \
        float(jnp.max(jnp.abs(last_hidden - ref_hidden)))
    assert jnp.allclose(pooled, ref_pooled, atol=2e-2, rtol=2e-2), \
        float(jnp.max(jnp.abs(pooled - ref_pooled)))

    # TODO(synk): sentences_forward / word_forward tokenizer-driven batch
    # re-merging (__merge_batch_back, __merge_hidden_states) is Python-side
    # ragged bookkeeping around the HF tokenizer, not kernel compute.
    print("KERNEL_OK")
</pallas_src>

<mosaic_0001>
module attributes {stable_mosaic.version = 11 : i64} {
  func.func @_encoder_kernel(%arg0: i32, %arg1: i32, %arg2: memref<8x128xf32, #tpu.memory_space<vmem>>, %arg3: memref<1x1x8xf32, #tpu.memory_space<vmem>>, %arg4: memref<3x128xf32, #tpu.memory_space<vmem>>, %arg5: memref<1x128x384xbf16, #tpu.memory_space<vmem>>, %arg6: memref<1x128x128xbf16, #tpu.memory_space<vmem>>, %arg7: memref<1x128x128xbf16, #tpu.memory_space<vmem>>, %arg8: memref<1x128x128xbf16, #tpu.memory_space<vmem>>, %arg9: memref<1x8x384xf32, #tpu.memory_space<vmem>>, %arg10: memref<128x128xbf16, #tpu.memory_space<vmem>>, %arg11: memref<8x128xf32, #tpu.memory_space<vmem>>, %arg12: memref<1x1x128xf32, #tpu.memory_space<vmem>>, %arg13: memref<8x128xf32, #tpu.memory_space<vmem>>, %arg14: memref<8x128xbf16, #tpu.memory_space<vmem>>) attributes {dimension_semantics = [#tpu.dimension_semantics<parallel>, #tpu.dimension_semantics<arbitrary>], iteration_bounds = array<i64: 2, 2>, scalar_prefetch = 0 : i64, scratch_operands = 2 : i64, tpu.core_type = #tpu.core_type<tc>, window_params = [{transform_indices = @transform_0, window_bounds = array<i64: 8, 128>}, {transform_indices = @transform_1, window_bounds = array<i64: 1, 1, 8>}, {pipeline_mode = #tpu.pipeline_mode<synchronous>, transform_indices = @transform_2, window_bounds = array<i64: 3, 128>}, {transform_indices = @transform_3, window_bounds = array<i64: 1, 128, 384>}, {transform_indices = @transform_4, window_bounds = array<i64: 1, 128, 128>}, {transform_indices = @transform_5, window_bounds = array<i64: 1, 128, 128>}, {transform_indices = @transform_6, window_bounds = array<i64: 1, 128, 128>}, {transform_indices = @transform_7, window_bounds = array<i64: 1, 8, 384>}, {pipeline_mode = #tpu.pipeline_mode<synchronous>, transform_indices = @transform_8, window_bounds = array<i64: 128, 128>}, {transform_indices = @transform_9, window_bounds = array<i64: 8, 128>}, {transform_indices = @transform_10, window_bounds = array<i64: 1, 1, 128>}]} {
    %c0_i32 = arith.constant 0 : i32
    %0 = arith.cmpi eq, %arg1, %c0_i32 : i32
    %1 = arith.extui %0 : i1 to i32
    %c0_i32_0 = arith.constant 0 : i32
    %2 = arith.cmpi ne, %1, %c0_i32_0 : i32
    scf.if %2 {
      %c0_57 = arith.constant 0 : index
      %c0_58 = arith.constant 0 : index
      %162 = vector.load %arg2[%c0_57, %c0_58] : memref<8x128xf32, #tpu.memory_space<vmem>>, vector<8x128xf32>
      %c0_59 = arith.constant 0 : index
      %c0_60 = arith.constant 0 : index
      %163 = vector.load %arg4[%c0_59, %c0_60] : memref<3x128xf32, #tpu.memory_space<vmem>>, vector<1x128xf32>
      %c1 = arith.constant 1 : index
      %c0_61 = arith.constant 0 : index
      %164 = vector.load %arg4[%c1, %c0_61] : memref<3x128xf32, #tpu.memory_space<vmem>>, vector<1x128xf32>
      %cst_62 = arith.constant dense<0.000000e+00> : vector<8xf32>
      %165 = vector.multi_reduction <add>, %162, %cst_62 [1] : vector<8x128xf32> to vector<8xf32>
      %166 = vector.shape_cast %165 : vector<8xf32> to vector<8x1xf32>
      %cst_63 = arith.constant 3.125000e-02 : f32
      %167 = vector.broadcast %cst_63 : f32 to vector<8x1xf32>
      %168 = arith.mulf %166, %167 : vector<8x1xf32>
      %169 = vector.broadcast %168 : vector<8x1xf32> to vector<8x128xf32>
      %170 = arith.subf %162, %169 : vector<8x128xf32>
      %171 = arith.mulf %170, %170 : vector<8x128xf32>
      %cst_64 = arith.constant dense<0.000000e+00> : vector<8xf32>
      %172 = vector.multi_reduction <add>, %171, %cst_64 [1] : vector<8x128xf32> to vector<8xf32>
      %173 = vector.shape_cast %172 : vector<8xf32> to vector<8x1xf32>
      %174 = arith.mulf %168, %168 : vector<8x1xf32>
      %cst_65 = arith.constant 9.600000e+01 : f32
      %175 = vector.broadcast %cst_65 : f32 to vector<8x1xf32>
      %176 = arith.mulf %175, %174 : vector<8x1xf32>
      %177 = arith.subf %173, %176 : vector<8x1xf32>
      %cst_66 = arith.constant 3.125000e-02 : f32
      %178 = vector.broadcast %cst_66 : f32 to vector<8x1xf32>
      %179 = arith.mulf %177, %178 : vector<8x1xf32>
      %cst_67 = arith.constant 9.99999996E-13 : f32
      %180 = vector.broadcast %cst_67 : f32 to vector<8x1xf32>
      %181 = arith.addf %179, %180 : vector<8x1xf32>
      %182 = math.rsqrt %181 : vector<8x1xf32>
      %183 = vector.broadcast %182 : vector<8x1xf32> to vector<8x128xf32>
      %184 = arith.mulf %170, %183 : vector<8x128xf32>
      %185 = vector.broadcast %163 : vector<1x128xf32> to vector<8x128xf32>
      %186 = arith.mulf %184, %185 : vector<8x128xf32>
      %187 = vector.broadcast %164 : vector<1x128xf32> to vector<8x128xf32>
      %188 = arith.addf %186, %187 : vector<8x128xf32>
      %c0_68 = arith.constant 0 : index
      %c0_69 = arith.constant 0 : index
      %189 = vector.load %arg13[%c0_68, %c0_69] : memref<8x128xf32, #tpu.memory_space<vmem>>, vector<8x128xf32>
      tpu.vector_store %arg13[%c0_68, %c0_69], %188 {strides = array<i32>} : memref<8x128xf32, #tpu.memory_space<vmem>>, vector<8x128xf32>,
      %cst_70 = arith.constant 0.000000e+00 : bf16
      %190 = vector.broadcast %cst_70 : bf16 to vector<8x128xbf16>
      %c0_71 = arith.constant 0 : index
      %c0_72 = arith.constant 0 : index
      %191 = vector.load %arg14[%c0_71, %c0_72] : memref<8x128xbf16, #tpu.memory_space<vmem>>, vector<8x128xbf16>
      tpu.vector_store %arg14[%c0_71, %c0_72], %190 {strides = array<i32>} : memref<8x128xbf16, #tpu.memory_space<vmem>>, vector<8x128xbf16>,
    } else {
    }
    %c0 = arith.constant 0 : index
    %c0_1 = arith.constant 0 : index
    %3 = vector.load %arg13[%c0, %c0_1] : memref<8x128xf32, #tpu.memory_space<vmem>>, vector<8x128xf32>
    %4 = arith.truncf %3 : vector<8x128xf32> to vector<8x128xbf16>
    %c0_2 = arith.constant 0 : index
    %c0_3 = arith.constant 0 : index
    %c0_4 = arith.constant 0 : index
    %5 = vector.load %arg9[%c0_2, %c0_3, %c0_4] : memref<1x8x384xf32, #tpu.memory_space<vmem>>, vector<1x8x384xf32>
    %6 = vector.shape_cast %5 : vector<1x8x384xf32> to vector<8x384xf32>
    %7 = vector.extract_strided_slice %6 {offsets = [0, 0], sizes = [1, 384], strides = [1, 1]} : vector<8x384xf32> to vector<1x384xf32>
    %8 = vector.extract_strided_slice %6 {offsets = [1, 0], sizes = [1, 128], strides = [1, 1]} : vector<8x384xf32> to vector<1x128xf32>
    %9 = vector.extract_strided_slice %6 {offsets = [2, 0], sizes = [1, 128], strides = [1, 1]} : vector<8x384xf32> to vector<1x128xf32>
    %10 = vector.extract_strided_slice %6 {offsets = [3, 0], sizes = [1, 128], strides = [1, 1]} : vector<8x384xf32> to vector<1x128xf32>
    %11 = vector.extract_strided_slice %6 {offsets = [4, 0], sizes = [1, 128], strides = [1, 1]} : vector<8x384xf32> to vector<1x128xf32>
    %12 = vector.extract_strided_slice %6 {offsets = [5, 0], sizes = [1, 128], strides = [1, 1]} : vector<8x384xf32> to vector<1x128xf32>
    %13 = vector.extract_strided_slice %6 {offsets = [6, 0], sizes = [1, 128], strides = [1, 1]} : vector<8x384xf32> to vector<1x128xf32>
    %14 = vector.extract_strided_slice %6 {offsets = [7, 0], sizes = [1, 128], strides = [1, 1]} : vector<8x384xf32> to vector<1x128xf32>
    %c0_5 = arith.constant 0 : index
    %c0_6 = arith.constant 0 : index
    %c0_7 = arith.constant 0 : index
    %15 = vector.load %arg5[%c0_5, %c0_6, %c0_7] : memref<1x128x384xbf16, #tpu.memory_space<vmem>>, vector<1x128x384xbf16>
    %16 = vector.shape_cast %15 : vector<1x128x384xbf16> to vector<128x384xbf16>
    %cst = arith.constant dense<0.000000e+00> : vector<8x384xf32>
    %17 = tpu.matmul %4, %16, %cst {dimension_numbers = #tpu.dot_dimension_numbers<[1], [0], [0], [1], [0, 0, 1, 1], [], []>} : vector<8x128xbf16>, vector<128x384xbf16>, vector<8x384xf32> -> vector<8x384xf32>
    %18 = vector.broadcast %7 : vector<1x384xf32> to vector<8x384xf32>
    %19 = arith.addf %17, %18 : vector<8x384xf32>
    %c0_8 = arith.constant 0 : index
    %c0_9 = arith.constant 0 : index
    %c0_10 = arith.constant 0 : index
    %20 = vector.load %arg3[%c0_8, %c0_9, %c0_10] : memref<1x1x8xf32, #tpu.memory_space<vmem>>, vector<1x1x8xf32>
    %21 = vector.extract_strided_slice %19 {offsets = [0, 0], sizes = [8, 16], strides = [1, 1]} : vector<8x384xf32> to vector<8x16xf32>
    %22 = vector.shape_cast %21 : vector<8x16xf32> to vector<1x8x16xf32>
    %23 = arith.truncf %22 : vector<1x8x16xf32> to vector<1x8x16xbf16>
    %24 = vector.extract_strided_slice %19 {offsets = [0, 128], sizes = [8, 16], strides = [1, 1]} : vector<8x384xf32> to vector<8x16xf32>
    %25 = vector.shape_cast %24 : vector<8x16xf32> to vector<1x8x16xf32>
    %26 = arith.truncf %25 : vector<1x8x16xf32> to vector<1x8x16xbf16>
    %27 = vector.extract_strided_slice %19 {offsets = [0, 256], sizes = [8, 16], strides = [1, 1]} : vector<8x384xf32> to vector<8x16xf32>
    %28 = vector.shape_cast %27 : vector<8x16xf32> to vector<1x8x16xf32>
    %29 = arith.truncf %28 : vector<1x8x16xf32> to vector<1x8x16xbf16>
    "tpu.trace_start"() <{level = 10 : i32, message = "bqd,bkd->bqk"}> : () -> ()
    %cst_11 = arith.constant dense<0.000000e+00> : vector<1x8x8xf32>
    %30 = tpu.matmul %23, %26, %cst_11 {dimension_numbers = #tpu.dot_dimension_numbers<[2], [2], [1], [1], [0, 0, 0, 1, 1, 1], [0], [0]>} : vector<1x8x16xbf16>, vector<1x8x16xbf16>, vector<1x8x8xf32> -> vector<1x8x8xf32>
    "tpu.trace_stop"() : () -> ()
    %cst_12 = arith.constant 2.500000e-01 : f32
    %31 = vector.broadcast %cst_12 : f32 to vector<1x8x8xf32>
    %32 = arith.mulf %30, %31 : vector<1x8x8xf32>
    %33 = vector.broadcast %20 : vector<1x1x8xf32> to vector<1x8x8xf32>
    %34 = arith.addf %32, %33 : vector<1x8x8xf32>
    %cst_13 = arith.constant dense<0xFF800000> : vector<1x8xf32>
    %35 = vector.multi_reduction <maximumf>, %34, %cst_13 [2] : vector<1x8x8xf32> to vector<1x8xf32>
    %36 = vector.shape_cast %35 : vector<1x8xf32> to vector<1x8x1xf32>
    %37 = vector.broadcast %36 : vector<1x8x1xf32> to vector<1x8x8xf32>
    %38 = arith.subf %34, %37 : vector<1x8x8xf32>
    %39 = math.exp %38 : vector<1x8x8xf32>
    %cst_14 = arith.constant dense<0.000000e+00> : vector<1x8xf32>
    %40 = vector.multi_reduction <add>, %39, %cst_14 [2] : vector<1x8x8xf32> to vector<1x8xf32>
    %41 = vector.shape_cast %40 : vector<1x8xf32> to vector<1x8x1xf32>
    %42 = vector.broadcast %41 : vector<1x8x1xf32> to vector<1x8x8xf32>
    %43 = arith.divf %39, %42 : vector<1x8x8xf32>
    %44 = arith.truncf %43 : vector<1x8x8xf32> to vector<1x8x8xbf16>
    "tpu.trace_start"() <{level = 10 : i32, message = "bqk,bkd->bqd"}> : () -> ()
    %cst_15 = arith.constant dense<0.000000e+00> : vector<1x8x16xf32>
    %45 = tpu.matmul %44, %29, %cst_15 {dimension_numbers = #tpu.dot_dimension_numbers<[2], [1], [1], [2], [0, 0, 0, 1, 1, 2], [0], [0]>} : vector<1x8x8xbf16>, vector<1x8x16xbf16>, vector<1x8x16xf32> -> vector<1x8x16xf32>
    "tpu.trace_stop"() : () -> ()
    %46 = vector.shape_cast %45 : vector<1x8x16xf32> to vector<8x16xf32>
    %47 = arith.truncf %46 : vector<8x16xf32> to vector<8x16xbf16>
    %c0_16 = arith.constant 0 : index
    %c0_17 = arith.constant 0 : index
    %48 = vector.load %arg14[%c0_16, %c0_17] : memref<8x128xbf16, #tpu.memory_space<vmem>>, vector<8x16xbf16>
    tpu.vector_store %arg14[%c0_16, %c0_17], %47 {strides = array<i32>} : memref<8x128xbf16, #tpu.memory_space<vmem>>, vector<8x16xbf16>,
    %49 = vector.extract_strided_slice %19 {offsets = [0, 16], sizes = [8, 16], strides = [1, 1]} : vector<8x384xf32> to vector<8x16xf32>
    %50 = vector.shape_cast %49 : vector<8x16xf32> to vector<1x8x16xf32>
    %51 = arith.truncf %50 : vector<1x8x16xf32> to vector<1x8x16xbf16>
    %52 = vector.extract_strided_slice %19 {offsets = [0, 144], sizes = [8, 16], strides = [1, 1]} : vector<8x384xf32> to vector<8x16xf32>
    %53 = vector.shape_cast %52 : vector<8x16xf32> to vector<1x8x16xf32>
    %54 = arith.truncf %53 : vector<1x8x16xf32> to vector<1x8x16xbf16>
    %55 = vector.extract_strided_slice %19 {offsets = [0, 272], sizes = [8, 16], strides = [1, 1]} : vector<8x384xf32> to vector<8x16xf32>
    %56 = vector.shape_cast %55 : vector<8x16xf32> to vector<1x8x16xf32>
    %57 = arith.truncf %56 : vector<1x8x16xf32> to vector<1x8x16xbf16>
    "tpu.trace_start"() <{level = 10 : i32, message = "bqd,bkd->bqk"}> : () -> ()
    %cst_18 = arith.constant dense<0.000000e+00> : vector<1x8x8xf32>
    %58 = tpu.matmul %51, %54, %cst_18 {dimension_numbers = #tpu.dot_dimension_numbers<[2], [2], [1], [1], [0, 0, 0, 1, 1, 1], [0], [0]>} : vector<1x8x16xbf16>, vector<1x8x16xbf16>, vector<1x8x8xf32> -> vector<1x8x8xf32>
    "tpu.trace_stop"() : () -> ()
    %cst_19 = arith.constant 2.500000e-01 : f32
    %59 = vector.broadcast %cst_19 : f32 to vector<1x8x8xf32>
    %60 = arith.mulf %58, %59 : vector<1x8x8xf32>
    %61 = vector.broadcast %20 : vector<1x1x8xf32> to vector<1x8x8xf32>
    %62 = arith.addf %60, %61 : vector<1x8x8xf32>
    %cst_20 = arith.constant dense<0xFF800000> : vector<1x8xf32>
    %63 = vector.multi_reduction <maximumf>, %62, %cst_20 [2] : vector<1x8x8xf32> to vector<1x8xf32>
    %64 = vector.shape_cast %63 : vector<1x8xf32> to vector<1x8x1xf32>
    %65 = vector.broadcast %64 : vector<1x8x1xf32> to vector<1x8x8xf32>
    %66 = arith.subf %62, %65 : vector<1x8x8xf32>
    %67 = math.exp %66 : vector<1x8x8xf32>
    %cst_21 = arith.constant dense<0.000000e+00> : vector<1x8xf32>
    %68 = vector.multi_reduction <add>, %67, %cst_21 [2] : vector<1x8x8xf32> to vector<1x8xf32>
    %69 = vector.shape_cast %68 : vector<1x8xf32> to vector<1x8x1xf32>
    %70 = vector.broadcast %69 : vector<1x8x1xf32> to vector<1x8x8xf32>
    %71 = arith.divf %67, %70 : vector<1x8x8xf32>
    %72 = arith.truncf %71 : vector<1x8x8xf32> to vector<1x8x8xbf16>
    "tpu.trace_start"() <{level = 10 : i32, message = "bqk,bkd->bqd"}> : () -> ()
    %cst_22 = arith.constant dense<0.000000e+00> : vector<1x8x16xf32>
    %73 = tpu.matmul %72, %57, %cst_22 {dimension_numbers = #tpu.dot_dimension_numbers<[2], [1], [1], [2], [0, 0, 0, 1, 1, 2], [0], [0]>} : vector<1x8x8xbf16>, vector<1x8x16xbf16>, vector<1x8x16xf32> -> vector<1x8x16xf32>
    "tpu.trace_stop"() : () -> ()
    %74 = vector.shape_cast %73 : vector<1x8x16xf32> to vector<8x16xf32>
    %75 = arith.truncf %74 : vector<8x16xf32> to vector<8x16xbf16>
    %c0_23 = arith.constant 0 : index
    %c16 = arith.constant 16 : index
    %76 = vector.load %arg14[%c0_23, %c16] : memref<8x128xbf16, #tpu.memory_space<vmem>>, vector<8x16xbf16>
    tpu.vector_store %arg14[%c0_23, %c16], %75 {strides = array<i32>} : memref<8x128xbf16, #tpu.memory_space<vmem>>, vector<8x16xbf16>,
    %c0_24 = arith.constant 0 : index
    %c0_25 = arith.constant 0 : index
    %77 = vector.load %arg14[%c0_24, %c0_25] : memref<8x128xbf16, #tpu.memory_space<vmem>>, vector<8x128xbf16>
    %c0_26 = arith.constant 0 : index
    %c0_27 = arith.constant 0 : index
    %c0_28 = arith.constant 0 : index
    %78 = vector.load %arg6[%c0_26, %c0_27, %c0_28] : memref<1x128x128xbf16, #tpu.memory_space<vmem>>, vector<1x128x128xbf16>
    %79 = vector.shape_cast %78 : vector<1x128x128xbf16> to vector<128x128xbf16>
    %cst_29 = arith.constant dense<0.000000e+00> : vector<8x128xf32>
    %80 = tpu.matmul %77, %79, %cst_29 {dimension_numbers = #tpu.dot_dimension_numbers<[1], [0], [0], [1], [0, 0, 1, 1], [], []>} : vector<8x128xbf16>, vector<128x128xbf16>, vector<8x128xf32> -> vector<8x128xf32>
    %81 = vector.broadcast %8 : vector<1x128xf32> to vector<8x128xf32>
    %82 = arith.addf %80, %81 : vector<8x128xf32>
    %83 = arith.addf %82, %3 : vector<8x128xf32>
    %cst_30 = arith.constant dense<0.000000e+00> : vector<8xf32>
    %84 = vector.multi_reduction <add>, %83, %cst_30 [1] : vector<8x128xf32> to vector<8xf32>
    %85 = vector.shape_cast %84 : vector<8xf32> to vector<8x1xf32>
    %cst_31 = arith.constant 3.125000e-02 : f32
    %86 = vector.broadcast %cst_31 : f32 to vector<8x1xf32>
    %87 = arith.mulf %85, %86 : vector<8x1xf32>
    %88 = vector.broadcast %87 : vector<8x1xf32> to vector<8x128xf32>
    %89 = arith.subf %83, %88 : vector<8x128xf32>
    %90 = arith.mulf %89, %89 : vector<8x128xf32>
    %cst_32 = arith.constant dense<0.000000e+00> : vector<8xf32>
    %91 = vector.multi_reduction <add>, %90, %cst_32 [1] : vector<8x128xf32> to vector<8xf32>
    %92 = vector.shape_cast %91 : vector<8xf32> to vector<8x1xf32>
    %93 = arith.mulf %87, %87 : vector<8x1xf32>
    %cst_33 = arith.constant 9.600000e+01 : f32
    %94 = vector.broadcast %cst_33 : f32 to vector<8x1xf32>
    %95 = arith.mulf %94, %93 : vector<8x1xf32>
    %96 = arith.subf %92, %95 : vector<8x1xf32>
    %cst_34 = arith.constant 3.125000e-02 : f32
    %97 = vector.broadcast %cst_34 : f32 to vector<8x1xf32>
    %98 = arith.mulf %96, %97 : vector<8x1xf32>
    %cst_35 = arith.constant 9.99999996E-13 : f32
    %99 = vector.broadcast %cst_35 : f32 to vector<8x1xf32>
    %100 = arith.addf %98, %99 : vector<8x1xf32>
    %101 = math.rsqrt %100 : vector<8x1xf32>
    %102 = vector.broadcast %101 : vector<8x1xf32> to vector<8x128xf32>
    %103 = arith.mulf %89, %102 : vector<8x128xf32>
    %104 = vector.broadcast %9 : vector<1x128xf32> to vector<8x128xf32>
    %105 = arith.mulf %103, %104 : vector<8x128xf32>
    %106 = vector.broadcast %10 : vector<1x128xf32> to vector<8x128xf32>
    %107 = arith.addf %105, %106 : vector<8x128xf32>
    %108 = arith.truncf %107 : vector<8x128xf32> to vector<8x128xbf16>
    %c0_36 = arith.constant 0 : index
    %c0_37 = arith.constant 0 : index
    %c0_38 = arith.constant 0 : index
    %109 = vector.load %arg7[%c0_36, %c0_37, %c0_38] : memref<1x128x128xbf16, #tpu.memory_space<vmem>>, vector<1x128x128xbf16>
    %110 = vector.shape_cast %109 : vector<1x128x128xbf16> to vector<128x128xbf16>
    %cst_39 = arith.constant dense<0.000000e+00> : vector<8x128xf32>
    %111 = tpu.matmul %108, %110, %cst_39 {dimension_numbers = #tpu.dot_dimension_numbers<[1], [0], [0], [1], [0, 0, 1, 1], [], []>} : vector<8x128xbf16>, vector<128x128xbf16>, vector<8x128xf32> -> vector<8x128xf32>
    %112 = vector.broadcast %11 : vector<1x128xf32> to vector<8x128xf32>
    %113 = arith.addf %111, %112 : vector<8x128xf32>
    %114 = arith.mulf %113, %113 : vector<8x128xf32>
    %115 = arith.mulf %113, %114 : vector<8x128xf32>
    %cst_40 = arith.constant 4.471500e-02 : f32
    %116 = vector.broadcast %cst_40 : f32 to vector<8x128xf32>
    %117 = arith.mulf %116, %115 : vector<8x128xf32>
    %118 = arith.addf %113, %117 : vector<8x128xf32>
    %cst_41 = arith.constant 0.797884583 : f32
    %119 = vector.broadcast %cst_41 : f32 to vector<8x128xf32>
    %120 = arith.mulf %119, %118 : vector<8x128xf32>
    %121 = math.tanh %120 : vector<8x128xf32>
    %cst_42 = arith.constant 1.000000e+00 : f32
    %122 = vector.broadcast %cst_42 : f32 to vector<8x128xf32>
    %123 = arith.addf %122, %121 : vector<8x128xf32>
    %cst_43 = arith.constant 5.000000e-01 : f32
    %124 = vector.broadcast %cst_43 : f32 to vector<8x128xf32>
    %125 = arith.mulf %124, %123 : vector<8x128xf32>
    %126 = arith.mulf %113, %125 : vector<8x128xf32>
    %127 = arith.truncf %126 : vector<8x128xf32> to vector<8x128xbf16>
    %c0_44 = arith.constant 0 : index
    %c0_45 = arith.constant 0 : index
    %c0_46 = arith.constant 0 : index
    %128 = vector.load %arg8[%c0_44, %c0_45, %c0_46] : memref<1x128x128xbf16, #tpu.memory_space<vmem>>, vector<1x128x128xbf16>
    %129 = vector.shape_cast %128 : vector<1x128x128xbf16> to vector<128x128xbf16>
    %cst_47 = arith.constant dense<0.000000e+00> : vector<8x128xf32>
    %130 = tpu.matmul %127, %129, %cst_47 {dimension_numbers = #tpu.dot_dimension_numbers<[1], [0], [0], [1], [0, 0, 1, 1], [], []>} : vector<8x128xbf16>, vector<128x128xbf16>, vector<8x128xf32> -> vector<8x128xf32>
    %131 = vector.broadcast %12 : vector<1x128xf32> to vector<8x128xf32>
    %132 = arith.addf %130, %131 : vector<8x128xf32>
    %133 = arith.addf %132, %107 : vector<8x128xf32>
    %cst_48 = arith.constant dense<0.000000e+00> : vector<8xf32>
    %134 = vector.multi_reduction <add>, %133, %cst_48 [1] : vector<8x128xf32> to vector<8xf32>
    %135 = vector.shape_cast %134 : vector<8xf32> to vector<8x1xf32>
    %cst_49 = arith.constant 3.125000e-02 : f32
    %136 = vector.broadcast %cst_49 : f32 to vector<8x1xf32>
    %137 = arith.mulf %135, %136 : vector<8x1xf32>
    %138 = vector.broadcast %137 : vector<8x1xf32> to vector<8x128xf32>
    %139 = arith.subf %133, %138 : vector<8x128xf32>
    %140 = arith.mulf %139, %139 : vector<8x128xf32>
    %cst_50 = arith.constant dense<0.000000e+00> : vector<8xf32>
    %141 = vector.multi_reduction <add>, %140, %cst_50 [1] : vector<8x128xf32> to vector<8xf32>
    %142 = vector.shape_cast %141 : vector<8xf32> to vector<8x1xf32>
    %143 = arith.mulf %137, %137 : vector<8x1xf32>
    %cst_51 = arith.constant 9.600000e+01 : f32
    %144 = vector.broadcast %cst_51 : f32 to vector<8x1xf32>
    %145 = arith.mulf %144, %143 : vector<8x1xf32>
    %146 = arith.subf %142, %145 : vector<8x1xf32>
    %cst_52 = arith.constant 3.125000e-02 : f32
    %147 = vector.broadcast %cst_52 : f32 to vector<8x1xf32>
    %148 = arith.mulf %146, %147 : vector<8x1xf32>
    %cst_53 = arith.constant 9.99999996E-13 : f32
    %149 = vector.broadcast %cst_53 : f32 to vector<8x1xf32>
    %150 = arith.addf %148, %149 : vector<8x1xf32>
    %151 = math.rsqrt %150 : vector<8x1xf32>
    %152 = vector.broadcast %151 : vector<8x1xf32> to vector<8x128xf32>
    %153 = arith.mulf %139, %152 : vector<8x128xf32>
    %154 = vector.broadcast %13 : vector<1x128xf32> to vector<8x128xf32>
    %155 = arith.mulf %153, %154 : vector<8x128xf32>
    %156 = vector.broadcast %14 : vector<1x128xf32> to vector<8x128xf32>
    %157 = arith.addf %155, %156 : vector<8x128xf32>
    %c0_54 = arith.constant 0 : index
    %c0_55 = arith.constant 0 : index
    %158 = vector.load %arg13[%c0_54, %c0_55] : memref<8x128xf32, #tpu.memory_space<vmem>>, vector<8x128xf32>
    tpu.vector_store %arg13[%c0_54, %c0_55], %157 {strides = array<i32>} : memref<8x128xf32, #tpu.memory_space<vmem>>, vector<8x128xf32>,
    %c1_i32 = arith.constant 1 : i32
    %159 = arith.cmpi eq, %arg1, %c1_i32 : i32
    %160 = arith.extui %159 : i1 to i32
    %c0_i32_56 = arith.constant 0 : i32
    %161 = arith.cmpi ne, %160, %c0_i32_56 : i32
    scf.if %161 {
      %c0_57 = arith.constant 0 : index
      %c0_58 = arith.constant 0 : index
      %162 = vector.load %arg11[%c0_57, %c0_58] : memref<8x128xf32, #tpu.memory_space<vmem>>, vector<8x128xf32>
      tpu.vector_store %arg11[%c0_57, %c0_58], %157 {strides = array<i32>} : memref<8x128xf32, #tpu.memory_space<vmem>>, vector<8x128xf32>,
      %163 = arith.truncf %157 : vector<8x128xf32> to vector<8x128xbf16>
      %c0_59 = arith.constant 0 : index
      %c0_60 = arith.constant 0 : index
      %164 = vector.load %arg10[%c0_59, %c0_60] : memref<128x128xbf16, #tpu.memory_space<vmem>>, vector<128x128xbf16>
      %cst_61 = arith.constant dense<0.000000e+00> : vector<8x128xf32>
      %165 = tpu.matmul %163, %164, %cst_61 {dimension_numbers = #tpu.dot_dimension_numbers<[1], [0], [0], [1], [0, 0, 1, 1], [], []>} : vector<8x128xbf16>, vector<128x128xbf16>, vector<8x128xf32> -> vector<8x128xf32>
      %c2 = arith.constant 2 : index
      %c0_62 = arith.constant 0 : index
      %166 = vector.load %arg4[%c2, %c0_62] : memref<3x128xf32, #tpu.memory_space<vmem>>, vector<1x128xf32>
      %167 = vector.broadcast %166 : vector<1x128xf32> to vector<8x128xf32>
      %168 = arith.addf %165, %167 : vector<8x128xf32>
      %169 = math.tanh %168 : vector<8x128xf32>
      %170 = vector.shape_cast %169 : vector<8x128xf32> to vector<1x8x128xf32>
      %171 = vector.extract_strided_slice %170 {offsets = [0, 0, 0], sizes = [1, 1, 128], strides = [1, 1, 1]} : vector<1x8x128xf32> to vector<1x1x128xf32>
      %c0_63 = arith.constant 0 : index
      %c0_64 = arith.constant 0 : index
      %c0_65 = arith.constant 0 : index
      %172 = vector.load %arg12[%c0_63, %c0_64, %c0_65] : memref<1x1x128xf32, #tpu.memory_space<vmem>>, vector<1x1x128xf32>
      tpu.vector_store %arg12[%c0_63, %c0_64, %c0_65], %171 {strides = array<i32>} : memref<1x1x128xf32, #tpu.memory_space<vmem>>, vector<1x1x128xf32>,
    } else {
    }
    return
  }
  func.func @transform_0(%arg0: i32, %arg1: i32) -> (i32, i32) {
    %c0_i32 = arith.constant 0 : i32
    %c0_i32_0 = arith.constant 0 : i32
    return %arg0, %c0_i32 : i32, i32
  }
  func.func @transform_1(%arg0: i32, %arg1: i32) -> (i32, i32, i32) {
    %c0_i32 = arith.constant 0 : i32
    %c0_i32_0 = arith.constant 0 : i32
    %c0_i32_1 = arith.constant 0 : i32
    return %arg0, %c0_i32, %c0_i32_0 : i32, i32, i32
  }
  func.func @transform_2(%arg0: i32, %arg1: i32) -> (i32, i32) {
    %c0_i32 = arith.constant 0 : i32
    %c0_i32_0 = arith.constant 0 : i32
    %c0_i32_1 = arith.constant 0 : i32
    return %c0_i32, %c0_i32_0 : i32, i32
  }
  func.func @transform_3(%arg0: i32, %arg1: i32) -> (i32, i32, i32) {
    %c0_i32 = arith.constant 0 : i32
    %c0_i32_0 = arith.constant 0 : i32
    %c0_i32_1 = arith.constant 0 : i32
    return %arg1, %c0_i32, %c0_i32_0 : i32, i32, i32
  }
  func.func @transform_4(%arg0: i32, %arg1: i32) -> (i32, i32, i32) {
    %c0_i32 = arith.constant 0 : i32
    %c0_i32_0 = arith.constant 0 : i32
    %c0_i32_1 = arith.constant 0 : i32
    return %arg1, %c0_i32, %c0_i32_0 : i32, i32, i32
  }
  func.func @transform_5(%arg0: i32, %arg1: i32) -> (i32, i32, i32) {
    %c0_i32 = arith.constant 0 : i32
    %c0_i32_0 = arith.constant 0 : i32
    %c0_i32_1 = arith.constant 0 : i32
    return %arg1, %c0_i32, %c0_i32_0 : i32, i32, i32
  }
  func.func @transform_6(%arg0: i32, %arg1: i32) -> (i32, i32, i32) {
    %c0_i32 = arith.constant 0 : i32
    %c0_i32_0 = arith.constant 0 : i32
    %c0_i32_1 = arith.constant 0 : i32
    return %arg1, %c0_i32, %c0_i32_0 : i32, i32, i32
  }
  func.func @transform_7(%arg0: i32, %arg1: i32) -> (i32, i32, i32) {
    %c0_i32 = arith.constant 0 : i32
    %c0_i32_0 = arith.constant 0 : i32
    %c0_i32_1 = arith.constant 0 : i32
    return %arg1, %c0_i32, %c0_i32_0 : i32, i32, i32
  }
  func.func @transform_8(%arg0: i32, %arg1: i32) -> (i32, i32) {
    %c0_i32 = arith.constant 0 : i32
    %c0_i32_0 = arith.constant 0 : i32
    %c0_i32_1 = arith.constant 0 : i32
    return %c0_i32, %c0_i32_0 : i32, i32
  }
  func.func @transform_9(%arg0: i32, %arg1: i32) -> (i32, i32) {
    %c0_i32 = arith.constant 0 : i32
    %c0_i32_0 = arith.constant 0 : i32
    return %arg0, %c0_i32 : i32, i32
  }
  func.func @transform_10(%arg0: i32, %arg1: i32) -> (i32, i32, i32) {
    %c0_i32 = arith.constant 0 : i32
    %c0_i32_0 = arith.constant 0 : i32
    %c0_i32_1 = arith.constant 0 : i32
    return %arg0, %c0_i32, %c0_i32_0 : i32, i32, i32
  }
}

</mosaic_0001>

<llo_original>
// kernel: tpu_custom_call.1
$region0: #{tpu_custom_call.1}
  #allocation0 [shape = 'u32[]', space=smem, size = 0x4, offset = 0x4, fixed_abs, tag = 'smem constant byte address 0x4 - core index']
  #allocation1 [shape = 'u32[72,128]{1,0:T(1,128)}', space=vmem, size = 0x9000, scoped, tag = 'internal scratch']
  #allocation2 [shape = 'f32[8,128]{1,0:T(8,128)}', space=vmem, size = 0x1000, scoped, tag = 'scratch operand']
  #allocation3 [shape = 'bf16[8,128]{1,0:T(8,128)(2,1)}', space=vmem, size = 0x800, scoped, tag = 'scratch operand']
  %s0 = inlined_call_operand.hbm [shape: f32[16,128], index: 0, kind: input, shape index: {}]
  %s1 = inlined_call_operand.hbm [shape: f32[2,1,8], index: 1, kind: input, shape index: {}]
  %s2 = inlined_call_operand.hbm [shape: f32[3,128], index: 2, kind: input, shape index: {}]
  %s3 = inlined_call_operand.hbm [shape: bf16[2,128,384], index: 3, kind: input, shape index: {}]
  %s4 = inlined_call_operand.hbm [shape: bf16[2,128,128], index: 4, kind: input, shape index: {}]
  %s5 = inlined_call_operand.hbm [shape: bf16[2,128,128], index: 5, kind: input, shape index: {}]
  %s6 = inlined_call_operand.hbm [shape: bf16[2,128,128], index: 6, kind: input, shape index: {}]
  %s7 = inlined_call_operand.hbm [shape: f32[2,8,384], index: 7, kind: input, shape index: {}]
  %s8 = inlined_call_operand.hbm [shape: bf16[128,128], index: 8, kind: input, shape index: {}]
  %s9 = inlined_call_operand.hbm [shape: f32[16,128], index: 9, kind: output, shape index: {0}]
  %s10 = inlined_call_operand.hbm [shape: f32[2,1,128], index: 10, kind: output, shape index: {1}]
  %11 = xla_tuple %s9, %s10
  %s12 = sld [smem:[#allocation0]]
  $region121: #{tpu_custom_call.1} parent=0
    _
  %s14 = ssub.s32 1, %s12
  %s15 = scalar_select 0, %s14, %s12
  $region1: #{tpu_custom_call.1} parent=0
    #allocation4 [shape = 'u8[8192]{0}', space=vmem, size = 0x2000, scoped, tag = 'input window, operand 0']
    #allocation5 [shape = 's32[2]{0}', space=sflag, size = 0x8, scoped, tag = 'scoped memory for tpu_custom_call.1']
    #allocation6 [shape = 's32[2]{0}', space=sflag, size = 0x8, scoped, tag = 'scoped memory for tpu_custom_call.1']
    #allocation7 [shape = 'u8[1024]{0}', space=vmem, size = 0x400, scoped, tag = 'input window, operand 1']
    #allocation8 [shape = 's32[2]{0}', space=sflag, size = 0x8, scoped, tag = 'scoped memory for tpu_custom_call.1']
    #allocation9 [shape = 'u8[2048]{0}', space=vmem, size = 0x800, scoped, tag = 'input window, operand 2, single buffered']
    #allocation10 [shape = 'u8[196608]{0}', space=vmem, size = 0x30000, scoped, tag = 'input window, operand 3']
    #allocation11 [shape = 's32[2]{0}', space=sflag, size = 0x8, scoped, tag = 'scoped memory for tpu_custom_call.1']
    #allocation12 [shape = 'u8[65536]{0}', space=vmem, size = 0x10000, scoped, tag = 'input window, operand 4']
    #allocation13 [shape = 'u8[65536]{0}', space=vmem, size = 0x10000, scoped, tag = 'input window, operand 5']
    #allocation14 [shape = 's32[2]{0}', space=sflag, size = 0x8, scoped, tag = 'scoped memory for tpu_custom_call.1']
    #allocation15 [shape = 'u8[65536]{0}', space=vmem, size = 0x10000, scoped, tag = 'input window, operand 6']
    #allocation16 [shape = 'u8[24576]{0}', space=vmem, size = 0x6000, scoped, tag = 'input window, operand 7']
    #allocation17 [shape = 's32[2]{0}', space=sflag, size = 0x8, scoped, tag = 'scoped memory for tpu_custom_call.1']
    #allocation18 [shape = 'u8[32768]{0}', space=vmem, size = 0x8000, scoped, tag = 'input window, operand 8, single buffered']
    #allocation19 [shape = 'u8[8192]{0}', space=vmem, size = 0x2000, scoped, tag = 'output window, operand 0']
    #allocation20 [shape = 'u8[1024]{0}', space=vmem, size = 0x400, scoped, tag = 'output window, operand 1']
    #allocation21 [shape = 's32[2]{0}', space=sflag, size = 0x8, scoped, tag = 'scoped memory for tpu_custom_call.1']
    %16 = vsyncpa [#allocation5], 0
    %s17 = scalar_lea.sflag [#allocation5], 1
    %18 = vsyncpa %s17, 0
    %19 = vsyncpa [#allocation8], 0
    %s20 = scalar_lea.sflag [#allocation8], 1
    %21 = vsyncpa %s20, 0
    %22 = vsyncpa [#allocation11], 0
    %s23 = scalar_lea.sflag [#allocation11], 1
    %24 = vsyncpa %s23, 0
    %25 = vsyncpa [#allocation14], 0
    %s26 = scalar_lea.sflag [#allocation14], 1
    %27 = vsyncpa %s26, 0
    %28 = vsyncpa [#allocation17], 0
    %s29 = scalar_lea.sflag [#allocation17], 1
    %30 = vsyncpa %s29, 0
    %31 = vsyncpa [#allocation6], 0
    %s32 = scalar_lea.sflag [#allocation6], 1
    %33 = vsyncpa %s32, 0
    %34 = vsyncpa [#allocation21], 0
    %s35 = scalar_lea.sflag [#allocation21], 1
    %36 = vsyncpa %s35, 0
    loop: start=0, step=1, limit=6
    $region2: #{tpu_custom_call.1} parent=1 // loop_pre_header
      _
    $region3: #{tpu_custom_call.1} parent=1 // loop_header
      %s38 = sphi 0, %s42
      %p39 = scmp.ge.s32.totalorder %s38, 6
      %s45 = sphi 0, %s57
      %s46 = sphi 0, %s53
      %s47 = sphi 0, %s45
      %s48 = sphi 0, %s46
      %s49 = sphi 0, %s47
      %s50 = sphi 0, %s48
      %s60 = sphi 0, %s62
      %s63 = sphi 0, %s60
      %s64 = sphi 0, %s63
      %s80 = sphi 0, %s64
      %s86 = sphi 0, %s88
      %s89 = sphi 0, %s86
      %s90 = sphi 0, %s89
      %s106 = sphi 0, %s90
      %s110 = sphi 0, %s110
      %s112 = sphi 0, %s110
      %s113 = sphi 0, %s112
      %s127 = sphi 0, %s113
      %s133 = sphi 0, %s135
      %s136 = sphi 0, %s133
      %s137 = sphi 0, %s136
      %s153 = sphi 0, %s137
      %s159 = sphi 0, %s161
      %s162 = sphi 0, %s159
      %s163 = sphi 0, %s162
      %s179 = sphi 0, %s163
      %s185 = sphi 0, %s187
      %s188 = sphi 0, %s185
      %s189 = sphi 0, %s188
      %s205 = sphi 0, %s189
      %s211 = sphi 0, %s213
      %s214 = sphi 0, %s211
      %s215 = sphi 0, %s214
      %s231 = sphi 0, %s215
      %s237 = sphi 0, %s239
      %s240 = sphi 0, %s237
      %s241 = sphi 0, %s240
      %s257 = sphi 0, %s241
      %s261 = sphi 0, %s261
      %s263 = sphi 0, %s261
      %s264 = sphi 0, %s263
      %s278 = sphi 0, %s264
      %s284 = sphi 0, %s286
      %s287 = sphi 0, %s284
      %s288 = sphi 0, %s287
      %s304 = sphi 0, %s288
      %s310 = sphi 0, %s312
      %s313 = sphi 0, %s310
      %s314 = sphi 0, %s313
      %s330 = sphi 0, %s314
    $region4: #{tpu_custom_call.1} parent=1 // loop_header_branch
      %41 = sbr.rel (%p39) target = $region8
    $region5: #{tpu_custom_call.1} parent=1 // loop_body
      %s43 = ssub.s32 %s38, 1
      %s44 = ssub.s32 %s38, 2
      %s51 = sadd.s32 1, %s46
      %p52 = scmp.ge.s32.totalorder %s51, 2
      %s53 = scalar_select %p52, 0, %s51
      %s54 = sadd.s32 1, %s45
      %s55 = scalar_select %p52, %s54, %s45
      %p56 = scmp.ge.s32.totalorder %s55, 2
      %s57 = scalar_select %p56, 0, %s55
      %s58 = ssub.s32 %s45, %s57
      %p59 = scmp.eq.s32.totalorder %s58, 0
      %s61 = sadd.s32 %s60, 1
      %s62 = scalar_select %p59, %s60, %s61
      %p65 = pneg %p59
      %p66 = scmp.eq.s32.totalorder %s38, 3
      %p67 = por %p65, %p66
      %p68 = scmp.ne.s32.totalorder %s60, %s63
      %p69 = scmp.eq.s32.totalorder %s38, 0
      %p70 = por %p68, %p69
      %p71 = scmp.ne.s32.totalorder %s60, %s63
      %p72 = scmp.eq.s32.totalorder %s43, 3
      %p73 = por %p71, %p72
      %p74 = scmp.ne.s32.totalorder %s63, %s64
      %p75 = scmp.eq.s32.totalorder %s43, 0
      %p76 = por %p74, %p75
      %p77 = scmp.ne.s32.totalorder %s63, %s64
      %p78 = scmp.eq.s32.totalorder %s44, 3
      %p79 = por %p77, %p78
      %p81 = scmp.ne.s32.totalorder %s64, %s80
      %p82 = scmp.eq.s32.totalorder %s44, 0
      %p83 = por %p81, %p82
      %s84 = ssub.s32 %s45, %s57
      %p85 = scmp.eq.s32.totalorder %s84, 0
      %s87 = sadd.s32 %s86, 1
      %s88 = scalar_select %p85, %s86, %s87
      %p91 = pneg %p85
      %p92 = scmp.eq.s32.totalorder %s38, 3
      %p93 = por %p91, %p92
      %p94 = scmp.ne.s32.totalorder %s86, %s89
      %p95 = scmp.eq.s32.totalorder %s38, 0
      %p96 = por %p94, %p95
      %p97 = scmp.ne.s32.totalorder %s86, %s89
      %p98 = scmp.eq.s32.totalorder %s43, 3
      %p99 = por %p97, %p98
      %p100 = scmp.ne.s32.totalorder %s89, %s90
      %p101 = scmp.eq.s32.totalorder %s43, 0
      %p102 = por %p100, %p101
      %p103 = scmp.ne.s32.totalorder %s89, %s90
      %p104 = scmp.eq.s32.totalorder %s44, 3
      %p105 = por %p103, %p104
      %p107 = scmp.ne.s32.totalorder %s90, %s106
      %p108 = scmp.eq.s32.totalorder %s44, 0
      %p109 = por %p107, %p108
      %s111 = sadd.s32 %s110, 1
      %p114 = scmp.eq.s32.totalorder %s38, 3
      %p115 = scmp.ne.s32.totalorder %s110, %s112
      %p116 = scmp.eq.s32.totalorder %s38, 0
      %p117 = por %p115, %p116
      %p118 = scmp.ne.s32.totalorder %s110, %s112
      %p119 = scmp.eq.s32.totalorder %s43, 3
      %p120 = por %p118, %p119
      %p121 = scmp.ne.s32.totalorder %s112, %s113
      %p122 = scmp.eq.s32.totalorder %s43, 0
      %p123 = por %p121, %p122
      %p124 = scmp.ne.s32.totalorder %s112, %s113
      %p125 = scmp.eq.s32.totalorder %s44, 3
      %p126 = por %p124, %p125
      %p128 = scmp.ne.s32.totalorder %s113, %s127
      %p129 = scmp.eq.s32.totalorder %s44, 0
      %p130 = por %p128, %p129
      %s131 = ssub.s32 %s46, %s53
      %p132 = scmp.eq.s32.totalorder %s131, 0
      %s134 = sadd.s32 %s133, 1
      %s135 = scalar_select %p132, %s133, %s134
      %p138 = pneg %p132
      %p139 = scmp.eq.s32.totalorder %s38, 3
      %p140 = por %p138, %p139
      %p141 = scmp.ne.s32.totalorder %s133, %s136
      %p142 = scmp.eq.s32.totalorder %s38, 0
      %p143 = por %p141, %p142
      %p144 = scmp.ne.s32.totalorder %s133, %s136
      %p145 = scmp.eq.s32.totalorder %s43, 3
      %p146 = por %p144, %p145
      %p147 = scmp.ne.s32.totalorder %s136, %s137
      %p148 = scmp.eq.s32.totalorder %s43, 0
      %p149 = por %p147, %p148
      %p150 = scmp.ne.s32.totalorder %s136, %s137
      %p151 = scmp.eq.s32.totalorder %s44, 3
      %p152 = por %p150, %p151
      %p154 = scmp.ne.s32.totalorder %s137, %s153
      %p155 = scmp.eq.s32.totalorder %s44, 0
      %p156 = por %p154, %p155
      %s157 = ssub.s32 %s46, %s53
      %p158 = scmp.eq.s32.totalorder %s157, 0
      %s160 = sadd.s32 %s159, 1
      %s161 = scalar_select %p158, %s159, %s160
      %p164 = pneg %p158
      %p165 = scmp.eq.s32.totalorder %s38, 3
      %p166 = por %p164, %p165
      %p167 = scmp.ne.s32.totalorder %s159, %s162
      %p168 = scmp.eq.s32.totalorder %s38, 0
      %p169 = por %p167, %p168
      %p170 = scmp.ne.s32.totalorder %s159, %s162
      %p171 = scmp.eq.s32.totalorder %s43, 3
      %p172 = por %p170, %p171
      %p173 = scmp.ne.s32.totalorder %s162, %s163
      %p174 = scmp.eq.s32.totalorder %s43, 0
      %p175 = por %p173, %p174
      %p176 = scmp.ne.s32.totalorder %s162, %s163
      %p177 = scmp.eq.s32.totalorder %s44, 3
      %p178 = por %p176, %p177
      %p180 = scmp.ne.s32.totalorder %s163, %s179
      %p181 = scmp.eq.s32.totalorder %s44, 0
      %p182 = por %p180, %p181
      %s183 = ssub.s32 %s46, %s53
      %p184 = scmp.eq.s32.totalorder %s183, 0
      %s186 = sadd.s32 %s185, 1
      %s187 = scalar_select %p184, %s185, %s186
      %p190 = pneg %p184
      %p191 = scmp.eq.s32.totalorder %s38, 3
      %p192 = por %p190, %p191
      %p193 = scmp.ne.s32.totalorder %s185, %s188
      %p194 = scmp.eq.s32.totalorder %s38, 0
      %p195 = por %p193, %p194
      %p196 = scmp.ne.s32.totalorder %s185, %s188
      %p197 = scmp.eq.s32.totalorder %s43, 3
      %p198 = por %p196, %p197
      %p199 = scmp.ne.s32.totalorder %s188, %s189
      %p200 = scmp.eq.s32.totalorder %s43, 0
      %p201 = por %p199, %p200
      %p202 = scmp.ne.s32.totalorder %s188, %s189
      %p203 = scmp.eq.s32.totalorder %s44, 3
      %p204 = por %p202, %p203
      %p206 = scmp.ne.s32.totalorder %s189, %s205
      %p207 = scmp.eq.s32.totalorder %s44, 0
      %p208 = por %p206, %p207
      %s209 = ssub.s32 %s46, %s53
      %p210 = scmp.eq.s32.totalorder %s209, 0
      %s212 = sadd.s32 %s211, 1
      %s213 = scalar_select %p210, %s211, %s212
      %p216 = pneg %p210
      %p217 = scmp.eq.s32.totalorder %s38, 3
      %p218 = por %p216, %p217
      %p219 = scmp.ne.s32.totalorder %s211, %s214
      %p220 = scmp.eq.s32.totalorder %s38, 0
      %p221 = por %p219, %p220
      %p222 = scmp.ne.s32.totalorder %s211, %s214
      %p223 = scmp.eq.s32.totalorder %s43, 3
      %p224 = por %p222, %p223
      %p225 = scmp.ne.s32.totalorder %s214, %s215
      %p226 = scmp.eq.s32.totalorder %s43, 0
      %p227 = por %p225, %p226
      %p228 = scmp.ne.s32.totalorder %s214, %s215
      %p229 = scmp.eq.s32.totalorder %s44, 3
      %p230 = por %p228, %p229
      %p232 = scmp.ne.s32.totalorder %s215, %s231
      %p233 = scmp.eq.s32.totalorder %s44, 0
      %p234 = por %p232, %p233
      %s235 = ssub.s32 %s46, %s53
      %p236 = scmp.eq.s32.totalorder %s235, 0
      %s238 = sadd.s32 %s237, 1
      %s239 = scalar_select %p236, %s237, %s238
      %p242 = pneg %p236
      %p243 = scmp.eq.s32.totalorder %s38, 3
      %p244 = por %p242, %p243
      %p245 = scmp.ne.s32.totalorder %s237, %s240
      %p246 = scmp.eq.s32.totalorder %s38, 0
      %p247 = por %p245, %p246
      %p248 = scmp.ne.s32.totalorder %s237, %s240
      %p249 = scmp.eq.s32.totalorder %s43, 3
      %p250 = por %p248, %p249
      %p251 = scmp.ne.s32.totalorder %s240, %s241
      %p252 = scmp.eq.s32.totalorder %s43, 0
      %p253 = por %p251, %p252
      %p254 = scmp.ne.s32.totalorder %s240, %s241
      %p255 = scmp.eq.s32.totalorder %s44, 3
      %p256 = por %p254, %p255
      %p258 = scmp.ne.s32.totalorder %s241, %s257
      %p259 = scmp.eq.s32.totalorder %s44, 0
      %p260 = por %p258, %p259
      %s262 = sadd.s32 %s261, 1
      %p265 = scmp.eq.s32.totalorder %s38, 3
      %p266 = scmp.ne.s32.totalorder %s261, %s263
      %p267 = scmp.eq.s32.totalorder %s38, 0
      %p268 = por %p266, %p267
      %p269 = scmp.ne.s32.totalorder %s261, %s263
      %p270 = scmp.eq.s32.totalorder %s43, 3
      %p271 = por %p269, %p270
      %p272 = scmp.ne.s32.totalorder %s263, %s264
      %p273 = scmp.eq.s32.totalorder %s43, 0
      %p274 = por %p272, %p273
      %p275 = scmp.ne.s32.totalorder %s263, %s264
      %p276 = scmp.eq.s32.totalorder %s44, 3
      %p277 = por %p275, %p276
      %p279 = scmp.ne.s32.totalorder %s264, %s278
      %p280 = scmp.eq.s32.totalorder %s44, 0
      %p281 = por %p279, %p280
      %s282 = ssub.s32 %s45, %s57
      %p283 = scmp.eq.s32.totalorder %s282, 0
      %s285 = sadd.s32 %s284, 1
      %s286 = scalar_select %p283, %s284, %s285
      %p289 = pneg %p283
      %p290 = scmp.eq.s32.totalorder %s38, 3
      %p291 = por %p289, %p290
      %p292 = scmp.ne.s32.totalorder %s284, %s287
      %p293 = scmp.eq.s32.totalorder %s38, 0
      %p294 = por %p292, %p293
      %p295 = scmp.ne.s32.totalorder %s284, %s287
      %p296 = scmp.eq.s32.totalorder %s43, 3
      %p297 = por %p295, %p296
      %p298 = scmp.ne.s32.totalorder %s287, %s288
      %p299 = scmp.eq.s32.totalorder %s43, 0
      %p300 = por %p298, %p299
      %p301 = scmp.ne.s32.totalorder %s287, %s288
      %p302 = scmp.eq.s32.totalorder %s44, 3
      %p303 = por %p301, %p302
      %p305 = scmp.ne.s32.totalorder %s288, %s304
      %p306 = scmp.eq.s32.totalorder %s44, 0
      %p307 = por %p305, %p306
      %s308 = ssub.s32 %s45, %s57
      %p309 = scmp.eq.s32.totalorder %s308, 0
      %s311 = sadd.s32 %s310, 1
      %s312 = scalar_select %p309, %s310, %s311
      %p315 = pneg %p309
      %p316 = scmp.eq.s32.totalorder %s38, 3
      %p317 = por %p315, %p316
      %p318 = scmp.ne.s32.totalorder %s310, %s313
      %p319 = scmp.eq.s32.totalorder %s38, 0
      %p320 = por %p318, %p319
      %p321 = scmp.ne.s32.totalorder %s310, %s313
      %p322 = scmp.eq.s32.totalorder %s43, 3
      %p323 = por %p321, %p322
      %p324 = scmp.ne.s32.totalorder %s313, %s314
      %p325 = scmp.eq.s32.totalorder %s43, 0
      %p326 = por %p324, %p325
      %p327 = scmp.ne.s32.totalorder %s313, %s314
      %p328 = scmp.eq.s32.totalorder %s44, 3
      %p329 = por %p327, %p328
      %p331 = scmp.ne.s32.totalorder %s314, %s330
      %p332 = scmp.eq.s32.totalorder %s44, 0
      %p333 = por %p331, %p332
      %p334 = scmp.le.s32.totalorder 1, %s38
      %p335 = scmp.lt.s32.totalorder %s38, 5
      %p336 = pnand %p334, %p335
      %p337 = pneg %p336
      // Predicated region
      $region9: #{tpu_custom_call.1} parent=5 // pred_check
        _
      $region10: #{tpu_custom_call.1} parent=5 // pred_check_branch
        %339 = sbr.rel (%p336) target = $region12
      $region11: #{tpu_custom_call.1} parent=5 // pred_region
        %s340 = ssub.s32 %s38, 1
        // Predicated region
        $region13: #{tpu_custom_call.1} parent=11 // pred_check
          %p341 = pneg %p123
        $region14: #{tpu_custom_call.1} parent=11 // pred_check_branch
          %343 = sbr.rel (%p341) target = $region16
        $region15: #{tpu_custom_call.1} parent=11 // pred_region
          %345 = vsyncadd [#allocation8], 0
          %s347 = sshll.u32 %s2, 4
          %s348 = int_to_ptr.hbm [resolvable:$true] %s347
          %s349 = sshll.u32 [#allocation9], 4
          %s350 = int_to_ptr.vmem [resolvable:$true] %s349
          %352 = dma.hbm_to_vmem [thread:$0]  %s348, 64, %s350, [#allocation8]
        $region16: #{tpu_custom_call.1} parent=11 // pred_fallthru
          _
        // Predicated region
        $region17: #{tpu_custom_call.1} parent=11 // pred_check
          %p353 = pneg %p274
        $region18: #{tpu_custom_call.1} parent=11 // pred_check_branch
          %355 = sbr.rel (%p353) target = $region20
        $region19: #{tpu_custom_call.1} parent=11 // pred_region
          %357 = vsyncadd [#allocation17], 0
          %s358 = sshll.u32 %s8, 4
          %s359 = int_to_ptr.hbm [resolvable:$true] %s358
          %s360 = sshll.u32 [#allocation18], 4
          %s361 = int_to_ptr.vmem [resolvable:$true] %s360
          %366 = dma.hbm_to_vmem [thread:$0]  %s359, 1024, %s361, [#allocation17], 64, 64, 4
        $region20: #{tpu_custom_call.1} parent=11 // pred_fallthru
          _
      $region12: #{tpu_custom_call.1} parent=5 // pred_fallthru
        _
      %p367 = scmp.lt.s32.totalorder %s38, 4
      // Predicated region
      $region21: #{tpu_custom_call.1} parent=5 // pred_check
        %p368 = pneg %p367
      $region22: #{tpu_custom_call.1} parent=5 // pred_check_branch
        %370 = sbr.rel (%p368) target = $region24
      $region23: #{tpu_custom_call.1} parent=5 // pred_region
        // Predicated region
        $region25: #{tpu_custom_call.1} parent=23 // pred_check
          %p371 = pneg %p70
        $region26: #{tpu_custom_call.1} parent=23 // pred_check_branch
          %373 = sbr.rel (%p371) target = $region28
        $region27: #{tpu_custom_call.1} parent=23 // pred_region
          %s374 = sand.u32 %s60, 1
          %s375 = scalar_lea.sflag [#allocation5], %s374
          %s376 = sand.u32 %s60, 1
          %s377 = smul.addr %s376, 8
          %s378 = scalar_lea.vmem [#allocation4], %s377
          %380 = vsyncadd %s375, 0
          %s381 = smul.addr %s45, 8
          %s382 = scalar_lea.hbm %s0, %s381
          %s384 = sshll.u32 %s382, 4
          %s385 = int_to_ptr.hbm [resolvable:$true] %s384
          %s386 = sshll.u32 %s378, 4
          %s387 = int_to_ptr.vmem [resolvable:$true] %s386
          %389 = dma.hbm_to_vmem [thread:$0]  %s385, 128, %s387, %s375
        $region28: #{tpu_custom_call.1} parent=23 // pred_fallthru
          _
        // Predicated region
        $region29: #{tpu_custom_call.1} parent=23 // pred_check
          %p390 = pneg %p96
        $region30: #{tpu_custom_call.1} parent=23 // pred_check_branch
          %392 = sbr.rel (%p390) target = $region32
        $region31: #{tpu_custom_call.1} parent=23 // pred_region
          %s393 = sand.u32 %s38, 1
          %s394 = scalar_lea.sflag [#allocation8], %s393
          %s395 = sand.u32 %s86, 1
          %s396 = scalar_lea.vmem [#allocation7], %s395
          %398 = vsyncadd %s394, 0
          %s399 = scalar_lea.hbm %s1, %s45
          %s401 = sshll.u32 %s399, 4
          %s402 = int_to_ptr.hbm [resolvable:$true] %s401
          %s403 = sshll.u32 %s396, 4
          %s404 = int_to_ptr.vmem [resolvable:$true] %s403
          %406 = dma.hbm_to_vmem [thread:$0]  %s402, 16, %s404, %s394
        $region32: #{tpu_custom_call.1} parent=23 // pred_fallthru
          _
        // Predicated region
        $region33: #{tpu_custom_call.1} parent=23 // pred_check
          %p407 = pneg %p143
        $region34: #{tpu_custom_call.1} parent=23 // pred_check_branch
          %409 = sbr.rel (%p407) target = $region36
        $region35: #{tpu_custom_call.1} parent=23 // pred_region
          %s410 = sand.u32 %s38, 1
          %s411 = scalar_lea.sflag [#allocation11], %s410
          %s412 = sand.u32 %s133, 1
          %s413 = smul.addr %s412, 192
          %s414 = scalar_lea.vmem [#allocation10], %s413
          %416 = vsyncadd %s411, 0
          %s417 = smul.addr %s46, 48
          %s418 = smul.addr %s417, 4
          %s419 = scalar_lea.hbm %s3, %s418
          %s420 = sshll.u32 %s419, 4
          %s421 = int_to_ptr.hbm [resolvable:$true] %s420
          %s422 = sshll.u32 %s414, 4
          %s423 = int_to_ptr.vmem [resolvable:$true] %s422
          %428 = dma.hbm_to_vmem [thread:$0]  %s421, 3072, %s423, %s411, 192, 192, 12
        $region36: #{tpu_custom_call.1} parent=23 // pred_fallthru
          _
        // Predicated region
        $region37: #{tpu_custom_call.1} parent=23 // pred_check
          %p429 = pneg %p169
        $region38: #{tpu_custom_call.1} parent=23 // pred_check_branch
          %431 = sbr.rel (%p429) target = $region40
        $region39: #{tpu_custom_call.1} parent=23 // pred_region
          %s432 = sand.u32 %s38, 1
          %s433 = scalar_lea.sflag [#allocation11], %s432
          %s434 = sand.u32 %s159, 1
          %s435 = smul.addr %s434, 64
          %s436 = scalar_lea.vmem [#allocation12], %s435
          %438 = vsyncadd %s433, 0
          %s439 = smul.addr %s46, 16
          %s440 = smul.addr %s439, 4
          %s441 = scalar_lea.hbm %s4, %s440
          %s442 = sshll.u32 %s441, 4
          %s443 = int_to_ptr.hbm [resolvable:$true] %s442
          %s444 = sshll.u32 %s436, 4
          %s445 = int_to_ptr.vmem [resolvable:$true] %s444
          %450 = dma.hbm_to_vmem [thread:$0]  %s443, 1024, %s445, %s433, 64, 64, 4
        $region40: #{tpu_custom_call.1} parent=23 // pred_fallthru
          _
        // Predicated region
        $region41: #{tpu_custom_call.1} parent=23 // pred_check
          %p451 = pneg %p195
        $region42: #{tpu_custom_call.1} parent=23 // pred_check_branch
          %453 = sbr.rel (%p451) target = $region44
        $region43: #{tpu_custom_call.1} parent=23 // pred_region
          %s454 = sand.u32 %s38, 1
          %s455 = scalar_lea.sflag [#allocation14], %s454
          %s456 = sand.u32 %s185, 1
          %s457 = smul.addr %s456, 64
          %s458 = scalar_lea.vmem [#allocation13], %s457
          %460 = vsyncadd %s455, 0
          %s461 = smul.addr %s46, 16
          %s462 = smul.addr %s461, 4
          %s463 = scalar_lea.hbm %s5, %s462
          %s464 = sshll.u32 %s463, 4
          %s465 = int_to_ptr.hbm [resolvable:$true] %s464
          %s466 = sshll.u32 %s458, 4
          %s467 = int_to_ptr.vmem [resolvable:$true] %s466
          %472 = dma.hbm_to_vmem [thread:$0]  %s465, 1024, %s467, %s455, 64, 64, 4
        $region44: #{tpu_custom_call.1} parent=23 // pred_fallthru
          _
        // Predicated region
        $region45: #{tpu_custom_call.1} parent=23 // pred_check
          %p473 = pneg %p221
        $region46: #{tpu_custom_call.1} parent=23 // pred_check_branch
          %475 = sbr.rel (%p473) target = $region48
        $region47: #{tpu_custom_call.1} parent=23 // pred_region
          %s476 = sand.u32 %s38, 1
          %s477 = scalar_lea.sflag [#allocation14], %s476
          %s478 = sand.u32 %s211, 1
          %s479 = smul.addr %s478, 64
          %s480 = scalar_lea.vmem [#allocation15], %s479
          %482 = vsyncadd %s477, 0
          %s483 = smul.addr %s46, 16
          %s484 = smul.addr %s483, 4
          %s485 = scalar_lea.hbm %s6, %s484
          %s486 = sshll.u32 %s485, 4
          %s487 = int_to_ptr.hbm [resolvable:$true] %s486
          %s488 = sshll.u32 %s480, 4
          %s489 = int_to_ptr.vmem [resolvable:$true] %s488
          %494 = dma.hbm_to_vmem [thread:$0]  %s487, 1024, %s489, %s477, 64, 64, 4
        $region48: #{tpu_custom_call.1} parent=23 // pred_fallthru
          _
        // Predicated region
        $region49: #{tpu_custom_call.1} parent=23 // pred_check
          %p495 = pneg %p247
        $region50: #{tpu_custom_call.1} parent=23 // pred_check_branch
          %497 = sbr.rel (%p495) target = $region52
        $region51: #{tpu_custom_call.1} parent=23 // pred_region
          %s498 = sand.u32 %s38, 1
          %s499 = scalar_lea.sflag [#allocation17], %s498
          %s500 = sand.u32 %s237, 1
          %s501 = smul.addr %s500, 24
          %s502 = scalar_lea.vmem [#allocation16], %s501
          %504 = vsyncadd %s499, 0
          %s505 = smul.addr %s46, 3
          %s506 = smul.addr %s505, 8
          %s507 = scalar_lea.hbm %s7, %s506
          %s509 = sshll.u32 %s507, 4
          %s510 = int_to_ptr.hbm [resolvable:$true] %s509
          %s511 = sshll.u32 %s502, 4
          %s512 = int_to_ptr.vmem [resolvable:$true] %s511
          %514 = dma.hbm_to_vmem [thread:$0]  %s510, 384, %s512, %s499
        $region52: #{tpu_custom_call.1} parent=23 // pred_fallthru
          _
      $region24: #{tpu_custom_call.1} parent=5 // pred_fallthru
        _
      %p515 = scmp.le.s32.totalorder 1, %s38
      %p516 = scmp.lt.s32.totalorder %s38, 5
      %p517 = pnand %p515, %p516
      %p518 = pneg %p517
      // Predicated region
      $region53: #{tpu_custom_call.1} parent=5 // pred_check
        _
      $region54: #{tpu_custom_call.1} parent=5 // pred_check_branch
        %520 = sbr.rel (%p517) target = $region56
      $region55: #{tpu_custom_call.1} parent=5 // pred_region
        %s521 = ssub.s32 %s38, 1
        %s522 = sand.u32 %s63, 1
        %s523 = scalar_lea.sflag [#allocation5], %s522
        %s524 = sand.u32 %s63, 1
        %s525 = smul.addr %s524, 8
        %s526 = scalar_lea.vmem [#allocation4], %s525
        // Predicated region
        $region57: #{tpu_custom_call.1} parent=55 // pred_check
          %p527 = pneg %p76
        $region58: #{tpu_custom_call.1} parent=55 // pred_check_branch
          %529 = sbr.rel (%p527) target = $region60
        $region59: #{tpu_custom_call.1} parent=55 // pred_region
          %531 = dma.done %s523, 128
        $region60: #{tpu_custom_call.1} parent=55 // pred_fallthru
          _
        %s532 = sand.u32 %s43, 1
        %s533 = scalar_lea.sflag [#allocation8], %s532
        %s534 = sand.u32 %s89, 1
        %s535 = scalar_lea.vmem [#allocation7], %s534
        // Predicated region
        $region61: #{tpu_custom_call.1} parent=55 // pred_check
          %p536 = pneg %p102
        $region62: #{tpu_custom_call.1} parent=55 // pred_check_branch
          %538 = sbr.rel (%p536) target = $region64
        $region63: #{tpu_custom_call.1} parent=55 // pred_region
          %540 = dma.done %s533, 16
        $region64: #{tpu_custom_call.1} parent=55 // pred_fallthru
          _
        // Predicated region
        $region65: #{tpu_custom_call.1} parent=55 // pred_check
          %p541 = pneg %p123
        $region66: #{tpu_custom_call.1} parent=55 // pred_check_branch
          %543 = sbr.rel (%p541) target = $region68
        $region67: #{tpu_custom_call.1} parent=55 // pred_region
          %545 = dma.done [#allocation8], 64
        $region68: #{tpu_custom_call.1} parent=55 // pred_fallthru
          _
        %s546 = sand.u32 %s43, 1
        %s547 = scalar_lea.sflag [#allocation11], %s546
        %s548 = sand.u32 %s136, 1
        %s549 = smul.addr %s548, 192
        %s550 = scalar_lea.vmem [#allocation10], %s549
        // Predicated region
        $region69: #{tpu_custom_call.1} parent=55 // pred_check
          %p551 = pneg %p149
        $region70: #{tpu_custom_call.1} parent=55 // pred_check_branch
          %553 = sbr.rel (%p551) target = $region72
        $region71: #{tpu_custom_call.1} parent=55 // pred_region
          %555 = dma.done %s547, 3072
        $region72: #{tpu_custom_call.1} parent=55 // pred_fallthru
          _
        %s556 = sand.u32 %s43, 1
        %s557 = scalar_lea.sflag [#allocation11], %s556
        %s558 = sand.u32 %s162, 1
        %s559 = smul.addr %s558, 64
        %s560 = scalar_lea.vmem [#allocation12], %s559
        // Predicated region
        $region73: #{tpu_custom_call.1} parent=55 // pred_check
          %p561 = pneg %p175
        $region74: #{tpu_custom_call.1} parent=55 // pred_check_branch
          %563 = sbr.rel (%p561) target = $region76
        $region75: #{tpu_custom_call.1} parent=55 // pred_region
          %565 = dma.done %s557, 1024
        $region76: #{tpu_custom_call.1} parent=55 // pred_fallthru
          _
        %s566 = sand.u32 %s43, 1
        %s567 = scalar_lea.sflag [#allocation14], %s566
        %s568 = sand.u32 %s188, 1
        %s569 = smul.addr %s568, 64
        %s570 = scalar_lea.vmem [#allocation13], %s569
        // Predicated region
        $region77: #{tpu_custom_call.1} parent=55 // pred_check
          %p571 = pneg %p201
        $region78: #{tpu_custom_call.1} parent=55 // pred_check_branch
          %573 = sbr.rel (%p571) target = $region80
        $region79: #{tpu_custom_call.1} parent=55 // pred_region
          %575 = dma.done %s567, 1024
        $region80: #{tpu_custom_call.1} parent=55 // pred_fallthru
          _
        %s576 = sand.u32 %s43, 1
        %s577 = scalar_lea.sflag [#allocation14], %s576
        %s578 = sand.u32 %s214, 1
        %s579 = smul.addr %s578, 64
        %s580 = scalar_lea.vmem [#allocation15], %s579
        // Predicated region
        $region81: #{tpu_custom_call.1} parent=55 // pred_check
          %p581 = pneg %p227
        $region82: #{tpu_custom_call.1} parent=55 // pred_check_branch
          %583 = sbr.rel (%p581) target = $region84
        $region83: #{tpu_custom_call.1} parent=55 // pred_region
          %585 = dma.done %s577, 1024
        $region84: #{tpu_custom_call.1} parent=55 // pred_fallthru
          _
        %s586 = sand.u32 %s43, 1
        %s587 = scalar_lea.sflag [#allocation17], %s586
        %s588 = sand.u32 %s240, 1
        %s589 = smul.addr %s588, 24
        %s590 = scalar_lea.vmem [#allocation16], %s589
        // Predicated region
        $region85: #{tpu_custom_call.1} parent=55 // pred_check
          %p591 = pneg %p253
        $region86: #{tpu_custom_call.1} parent=55 // pred_check_branch
          %593 = sbr.rel (%p591) target = $region88
        $region87: #{tpu_custom_call.1} parent=55 // pred_region
          %595 = dma.done %s587, 384
        $region88: #{tpu_custom_call.1} parent=55 // pred_fallthru
          _
        // Predicated region
        $region89: #{tpu_custom_call.1} parent=55 // pred_check
          %p596 = pneg %p274
        $region90: #{tpu_custom_call.1} parent=55 // pred_check_branch
          %598 = sbr.rel (%p596) target = $region92
        $region91: #{tpu_custom_call.1} parent=55 // pred_region
          %600 = dma.done [#allocation17], 1024
        $region92: #{tpu_custom_call.1} parent=55 // pred_fallthru
          _
        %s601 = sand.u32 %s63, 1
        %s602 = scalar_lea.sflag [#allocation5], %s601
        %s603 = sand.u32 %s63, 1
        %s604 = smul.addr %s603, 8
        %s605 = scalar_lea.vmem [#allocation4], %s604
        %p606 = pneg %p76
        %p607 = pneg %p73
        %s608 = sand.u32 %s43, 1
        %s609 = scalar_lea.sflag [#allocation8], %s608
        %s610 = sand.u32 %s89, 1
        %s611 = scalar_lea.vmem [#allocation7], %s610
        %p612 = pneg %p102
        %p613 = pneg %p99
        %p614 = pneg %p123
        %p615 = pneg %p120
        %s616 = sand.u32 %s43, 1
        %s617 = scalar_lea.sflag [#allocation11], %s616
        %s618 = sand.u32 %s136, 1
        %s619 = smul.addr %s618, 192
        %s620 = scalar_lea.vmem [#allocation10], %s619
        %p621 = pneg %p149
        %p622 = pneg %p146
        %s623 = sand.u32 %s43, 1
        %s624 = scalar_lea.sflag [#allocation11], %s623
        %s625 = sand.u32 %s162, 1
        %s626 = smul.addr %s625, 64
        %s627 = scalar_lea.vmem [#allocation12], %s626
        %p628 = pneg %p175
        %p629 = pneg %p172
        %s630 = sand.u32 %s43, 1
        %s631 = scalar_lea.sflag [#allocation14], %s630
        %s632 = sand.u32 %s188, 1
        %s633 = smul.addr %s632, 64
        %s634 = scalar_lea.vmem [#allocation13], %s633
        %p635 = pneg %p201
        %p636 = pneg %p198
        %s637 = sand.u32 %s43, 1
        %s638 = scalar_lea.sflag [#allocation14], %s637
        %s639 = sand.u32 %s214, 1
        %s640 = smul.addr %s639, 64
        %s641 = scalar_lea.vmem [#allocation15], %s640
        %p642 = pneg %p227
        %p643 = pneg %p224
        %s644 = sand.u32 %s43, 1
        %s645 = scalar_lea.sflag [#allocation17], %s644
        %s646 = sand.u32 %s240, 1
        %s647 = smul.addr %s646, 24
        %s648 = scalar_lea.vmem [#allocation16], %s647
        %p649 = pneg %p253
        %p650 = pneg %p250
        %p651 = pneg %p274
        %p652 = pneg %p271
        %p653 = pneg %p300
        %p654 = pneg %p297
        %s655 = sand.u32 %s287, 1
        %s656 = scalar_lea.sflag [#allocation6], %s655
        %s657 = sand.u32 %s287, 1
        %s658 = smul.addr %s657, 8
        %s659 = scalar_lea.vmem [#allocation19], %s658
        %p660 = pneg %p326
        %p661 = pneg %p323
        %s662 = sand.u32 %s313, 1
        %s663 = scalar_lea.sflag [#allocation21], %s662
        %s664 = sand.u32 %s313, 1
        %s665 = scalar_lea.vmem [#allocation20], %s664
        %p667 = scmp.eq.s32.totalorder %s48, 0
        // Predicated region
        $region93: #{tpu_custom_call.1} parent=55 // pred_check
          %p668 = pneg %p667
        $region94: #{tpu_custom_call.1} parent=55 // pred_check_branch
          %670 = sbr.rel (%p668) target = $region96
        $region95: #{tpu_custom_call.1} parent=55 // pred_region
          %v671 = vld [vmem:[%s526] sm:$0xff]
          %v672 = vld [vmem:[#allocation9] sm:$0x1]
          %v673 = vld [vmem:[#allocation9 + $0x1] sm:$0x1]
          %674 = vadd.xlane.f32.xlu0 %v671
          %v675 = vpop.xlane.xlu0 %674
          %v676 = vmul.f32 %v675, 0.03125
          %v677 = vsub.f32 %v671, %v676
          %v678 = vmul.f32 %v677, %v677
          %679 = vadd.xlane.f32.xlu0 %v678
          %v680 = vpop.xlane.xlu0 %679
          %v681 = vmul.f32 %v676, %v676
          %v682 = vmul.f32 %v681, 96.0
          %v683 = vsub.f32 %v680, %v682
          %v684 = vmul.f32 %v683, 0.03125
          %v685 = vadd.f32 %v684, 1e-12
          %v686 = vrsqrt.pop %v685
          %v687 = vmul.f32 %v686, %v685
          %v688 = vmul.f32 %v687, %v686
          %v689 = vmul.f32 0.5, %v688
          %v690 = vsub.f32 1.5, %v689
          %v691 = vmul.f32 %v686, %v690
          %vm692 = vweird.f32 %v685
          %vm693 = vweird.f32 %v686
          %vm694 = vmor %vm692, %vm693
          %v695 = vsel %vm694, %v686, %v691
          %v696 = vmul.f32 %v677, %v695
          %v697 = vperm.slane %v672, 0
          %v698 = vmul.f32 %v696, %v697
          %v699 = vperm.slane %v673, 0
          %v700 = vadd.f32 %v698, %v699
          %701 = vst [vmem:[#allocation2] sm:$0xff] %v700
          %702 = vst [vmem:[#allocation3] sm:$0xf] 0
        $region96: #{tpu_custom_call.1} parent=55 // pred_fallthru
          _
        %v703 = vld [vmem:[#allocation2] sm:$0xff]
        %v704 = vpack.c.bf16 %v703, %v703
        %v705 = vld [vmem:[%s590] sm:$0xff]
        %v706 = vld [vmem:[%s590 + $0x8] sm:$0xff]
        %v707 = vld [vmem:[%s590 + $0x10] sm:$0xff]
        %v708 = vld [vmem:[%s550] sm:$0xff]
        %v709 = vld [vmem:[%s550 + $0x8] sm:$0xf]
        %v710 = vld [vmem:[%s550 + $0xc] sm:$0xff]
        %v711 = vld [vmem:[%s550 + $0x14] sm:$0xf]
        %v712 = vld [vmem:[%s550 + $0x18] sm:$0xff]
        %v713 = vld [vmem:[%s550 + $0x20] sm:$0xf]
        %v714 = vld [vmem:[%s550 + $0x24] sm:$0xff]
        %v715 = vld [vmem:[%s550 + $0x2c] sm:$0xf]
        %v716 = vld [vmem:[%s550 + $0x30] sm:$0xff]
        %v717 = vld [vmem:[%s550 + $0x38] sm:$0xf]
        %v718 = vld [vmem:[%s550 + $0x3c] sm:$0xff]
        %v719 = vld [vmem:[%s550 + $0x44] sm:$0xf]
        %v720 = vld [vmem:[%s550 + $0x48] sm:$0xff]
        %v721 = vld [vmem:[%s550 + $0x50] sm:$0xf]
        %v722 = vld [vmem:[%s550 + $0x54] sm:$0xff]
        %v723 = vld [vmem:[%s550 + $0x5c] sm:$0xf]
        %v724 = vld [vmem:[%s550 + $0x60] sm:$0xff]
        %v725 = vld [vmem:[%s550 + $0x68] sm:$0xf]
        %v726 = vld [vmem:[%s550 + $0x6c] sm:$0xff]
        %v727 = vld [vmem:[%s550 + $0x74] sm:$0xf]
        %v728 = vld [vmem:[%s550 + $0x78] sm:$0xff]
        %v729 = vld [vmem:[%s550 + $0x80] sm:$0xf]
        %v730 = vld [vmem:[%s550 + $0x84] sm:$0xff]
        %v731 = vld [vmem:[%s550 + $0x8c] sm:$0xf]
        %v732 = vld [vmem:[%s550 + $0x90] sm:$0xff]
        %v733 = vld [vmem:[%s550 + $0x98] sm:$0xf]
        %v734 = vld [vmem:[%s550 + $0x9c] sm:$0xff]
        %v735 = vld [vmem:[%s550 + $0xa4] sm:$0xf]
        %v736 = vld [vmem:[%s550 + $0xa8] sm:$0xff]
        %v737 = vld [vmem:[%s550 + $0xb0] sm:$0xf]
        %v738 = vld [vmem:[%s550 + $0xb4] sm:$0xff]
        %v739 = vld [vmem:[%s550 + $0xbc] sm:$0xf]
        %v740 = vperm.slane %v705, 0
        %v741 = vperm.slane %v706, 0
        %v742 = vperm.slane %v707, 0
        %v775 = vunpack.c.l.b16 %v708
        %v776 = vunpack.c.h.b16 %v708
        %v777 = vunpack.c.l.b16 %v709
        %v778 = vunpack.c.l.b16 %v710
        %v779 = vunpack.c.h.b16 %v710
        %v780 = vunpack.c.l.b16 %v711
        %v781 = vunpack.c.l.b16 %v712
        %v782 = vunpack.c.h.b16 %v712
        %v783 = vunpack.c.l.b16 %v713
        %v784 = vunpack.c.l.b16 %v714
        %v785 = vunpack.c.h.b16 %v714
        %v786 = vunpack.c.l.b16 %v715
        %v787 = vunpack.c.l.b16 %v716
        %v788 = vunpack.c.h.b16 %v716
        %v789 = vunpack.c.l.b16 %v717
        %v790 = vunpack.c.l.b16 %v718
        %v791 = vunpack.c.h.b16 %v718
        %v792 = vunpack.c.l.b16 %v719
        %v793 = vunpack.c.l.b16 %v720
        %v794 = vunpack.c.h.b16 %v720
        %v795 = vunpack.c.l.b16 %v721
        %v796 = vunpack.c.l.b16 %v722
        %v797 = vunpack.c.h.b16 %v722
        %v798 = vunpack.c.l.b16 %v723
        %v799 = vunpack.c.l.b16 %v724
        %v800 = vunpack.c.h.b16 %v724
        %v801 = vunpack.c.l.b16 %v725
        %v802 = vunpack.c.l.b16 %v726
        %v803 = vunpack.c.h.b16 %v726
        %v804 = vunpack.c.l.b16 %v727
        %v805 = vunpack.c.l.b16 %v728
        %v806 = vunpack.c.h.b16 %v728
        %v807 = vunpack.c.l.b16 %v729
        %v808 = vunpack.c.l.b16 %v730
        %v809 = vunpack.c.h.b16 %v730
        %v810 = vunpack.c.l.b16 %v731
        %v811 = vunpack.c.l.b16 %v732
        %v812 = vunpack.c.h.b16 %v732
        %v813 = vunpack.c.l.b16 %v733
        %v814 = vunpack.c.l.b16 %v734
        %v815 = vunpack.c.h.b16 %v734
        %v816 = vunpack.c.l.b16 %v735
        %v817 = vunpack.c.l.b16 %v736
        %v818 = vunpack.c.h.b16 %v736
        %v819 = vunpack.c.l.b16 %v737
        %v820 = vunpack.c.l.b16 %v738
        %v821 = vunpack.c.h.b16 %v738
        %v822 = vunpack.c.l.b16 %v739
        %v823 = vpack.c.b16 %v778, %v775
        %v824 = vpack.c.b16 %v779, %v776
        %v825 = vpack.c.b16 %v780, %v777
        %v826 = vpack.c.b16 %v784, %v781
        %v827 = vpack.c.b16 %v785, %v782
        %v828 = vpack.c.b16 %v786, %v783
        %v829 = vpack.c.b16 %v790, %v787
        %v830 = vpack.c.b16 %v791, %v788
        %v831 = vpack.c.b16 %v792, %v789
        %v832 = vpack.c.b16 %v796, %v793
        %v833 = vpack.c.b16 %v797, %v794
        %v834 = vpack.c.b16 %v798, %v795
        %v835 = vpack.c.b16 %v802, %v799
        %v836 = vpack.c.b16 %v803, %v800
        %v837 = vpack.c.b16 %v804, %v801
        %v838 = vpack.c.b16 %v808, %v805
        %v839 = vpack.c.b16 %v809, %v806
        %v840 = vpack.c.b16 %v810, %v807
        %v841 = vpack.c.b16 %v814, %v811
        %v842 = vpack.c.b16 %v815, %v812
        %v843 = vpack.c.b16 %v816, %v813
        %v844 = vpack.c.b16 %v820, %v817
        %v845 = vpack.c.b16 %v821, %v818
        %v846 = vpack.c.b16 %v822, %v819
        %871 = vmatpush.bf16.msra.mxu0 %v844
        %872 = vmatpush.bf16.msra.mxu0 %v841
        %873 = vmatpush.bf16.msra.mxu0 %v838
        %874 = vmatpush.bf16.msra.mxu0 %v835
        %875 = vmatpush.bf16.msra.mxu0 %v832
        %876 = vmatpush.bf16.msra.mxu0 %v829
        %877 = vmatpush.bf16.msra.mxu0 %v826
        %878 = vmatpush.bf16.msra.mxu0 %v823
        %879 = vmatmul.bf16.gmra.mxu0 %v704
        %v880 = vpop.f32.mrf.mxu0
        %v881 = vadd.f32 %v740, %v880
        %v882 = vpop.f32.mrf.mxu0
        %883 = vdwg.mxu0
        %884 = vmatpush.bf16.msra.mxu0 %v845
        %885 = vmatpush.bf16.msra.mxu0 %v842
        %886 = vmatpush.bf16.msra.mxu0 %v839
        %887 = vmatpush.bf16.msra.mxu0 %v836
        %888 = vmatpush.bf16.msra.mxu0 %v833
        %889 = vmatpush.bf16.msra.mxu0 %v830
        %890 = vmatpush.bf16.msra.mxu0 %v827
        %891 = vmatpush.bf16.msra.mxu0 %v824
        %892 = vmatmul.bf16.gmra.mxu0 %v704
        %v893 = vpop.f32.mrf.mxu0
        %v894 = vadd.f32 %v741, %v893
        %v895 = vpop.f32.mrf.mxu0
        %896 = vdwg.mxu0
        %897 = vmatpush.bf16.msra.mxu0 %v846
        %898 = vmatpush.bf16.msra.mxu0 %v843
        %899 = vmatpush.bf16.msra.mxu0 %v840
        %900 = vmatpush.bf16.msra.mxu0 %v837
        %901 = vmatpush.bf16.msra.mxu0 %v834
        %902 = vmatpush.bf16.msra.mxu0 %v831
        %903 = vmatpush.bf16.msra.mxu0 %v828
        %904 = vmatpush.bf16.msra.mxu0 %v825
        %905 = vmatmul.bf16.gmra.mxu0 %v704
        %v906 = vpop.f32.mrf.mxu0
        %v907 = vadd.f32 %v742, %v906
        %v908 = vpop.f32.mrf.mxu0
        %909 = vdwg.mxu0
        %v910 = vld [vmem:[%s535] sm:$0x1]
        %v911 = vpack.c.bf16 %v881, %v881
        %v912 = vpack.c.bf16 %v894, %v894
        %v913 = vpack.c.bf16 %v907, %v907
        %vm914 = vcmask 130048
        %v916 = vsel %vm914, %v911, 0
        %v919 = vsel %vm914, %v912, 0
        %921 = vmatpush.bf16.xpose.msra.mxu0 0
        %922 = vmatpush.bf16.xpose.msra.mxu0 0
        %923 = vmatpush.bf16.xpose.msra.mxu0 0
        %924 = vmatpush.bf16.xpose.msra.mxu0 0
        %925 = vmatpush.bf16.xpose.msra.mxu0 0
        %926 = vmatpush.bf16.xpose.msra.mxu0 0
        %927 = vmatpush.bf16.xpose.msra.mxu0 0
        %928 = vmatpush.bf16.xpose.msra.mxu0 %v919
        %929 = vmatmul.bf16.gmra.mxu0 %v916
        %v930 = vpop.f32.mrf.mxu0
        %v931 = vadd.f32 0.0, %v930
        %v932 = vpop.f32.mrf.mxu0
        %933 = vdwg.mxu0
        %v934 = vmul.f32 %v931, 0.25
        %v936 = vperm.slane %v910, 0
        %v938 = vadd.f32 %v934, %v936
        %vm939 = vcmask 64512
        %v940 = vsel %vm939, %v938, -inf
        %941 = vmax.xlane.f32.xlu0 %v940
        %v942 = vpop.xlane.xlu0 %941
        %v943 = vsub.f32 %v938, %v942
        %v944 = vmul.f32 %v943, 1.442695
        %v945 = vpow.pop %v944
        %v946 = vsel %vm939, %v945, 0.0
        %947 = vadd.xlane.f32.xlu0 %v946
        %v948 = vpop.xlane.xlu0 %947
        %v949 = vrcp.pop %v948
        %v950 = vmul.f32 %v948, %v949
        %v951 = vsub.f32 1.0, %v950
        %v952 = vmul.f32 %v949, %v951
        %v953 = vadd.f32 %v949, %v952
        %vm954 = vweird.f32 %v948
        %vm955 = vweird.f32 %v949
        %vm956 = vmor %vm954, %vm955
        %v957 = vsel %vm956, %v949, %v953
        %v958 = vand.u32 2147483647, %v948
        %vm959 = vcmp.eq.f32.partialorder %v958, 8.507059e+37
        %v960 = vand.u32 %v948, 2147483648
        %v961 = vor.u32 1.1754944e-38, %v960
        %v962 = vsel %vm959, %v961, %v957
        %v963 = vmul.f32 %v945, %v962
        %v964 = vpack.c.bf16 %v963, %v963
        %v966 = vsel %vm939, %v964, 0
        %vm968 = vcmask 1043456
        %v970 = vsel %vm968, %v913, 0
        %972 = vmatpush.bf16.msra.mxu0 0
        %973 = vmatpush.bf16.msra.mxu0 0
        %974 = vmatpush.bf16.msra.mxu0 0
        %975 = vmatpush.bf16.msra.mxu0 0
        %976 = vmatpush.bf16.msra.mxu0 0
        %977 = vmatpush.bf16.msra.mxu0 0
        %978 = vmatpush.bf16.msra.mxu0 0
        %979 = vmatpush.bf16.msra.mxu0 %v970
        %980 = vmatmul.bf16.gmra.mxu0 %v966
        %v981 = vpop.f32.mrf.mxu0
        %v982 = vadd.f32 0.0, %v981
        %v983 = vpop.f32.mrf.mxu0
        %984 = vdwg.mxu0
        %v985 = vpack.c.bf16 %v982, %v982
        %vm986 = vcmask 125952
        %987 = vst.msk [vmem:[#allocation3] sm:$0xf] %vm986, %v985
        %v989 = vunpack.c.l.b16 %v911
        %v990 = vpack.c.b16 %v989, %v989
        %991 = vrot.lane.b32.xlu0 %v990, 112
        %v992 = vpop.permute.xlu0 %991
        %v994 = vunpack.c.l.b16 %v912
        %v995 = vpack.c.b16 %v994, %v994
        %996 = vrot.lane.b32.xlu0 %v995, 112
        %v997 = vpop.permute.xlu0 %996
        %v999 = vsel %vm914, %v992, 0
        %v1002 = vsel %vm914, %v997, 0
        %1004 = vmatpush.bf16.xpose.msra.mxu0 0
        %1005 = vmatpush.bf16.xpose.msra.mxu0 0
        %1006 = vmatpush.bf16.xpose.msra.mxu0 0
        %1007 = vmatpush.bf16.xpose.msra.mxu0 0
        %1008 = vmatpush.bf16.xpose.msra.mxu0 0
        %1009 = vmatpush.bf16.xpose.msra.mxu0 0
        %1010 = vmatpush.bf16.xpose.msra.mxu0 0
        %1011 = vmatpush.bf16.xpose.msra.mxu0 %v1002
        %1012 = vmatmul.bf16.gmra.mxu0 %v999
        %v1013 = vpop.f32.mrf.mxu0
        %v1014 = vadd.f32 0.0, %v1013
        %v1015 = vpop.f32.mrf.mxu0
        %1016 = vdwg.mxu0
        %v1017 = vmul.f32 %v1014, 0.25
        %v1018 = vadd.f32 %v1017, %v936
        %v1019 = vsel %vm939, %v1018, -inf
        %1020 = vmax.xlane.f32.xlu0 %v1019
        %v1021 = vpop.xlane.xlu0 %1020
        %v1022 = vsub.f32 %v1018, %v1021
        %v1023 = vmul.f32 %v1022, 1.442695
        %v1024 = vpow.pop %v1023
        %v1025 = vsel %vm939, %v1024, 0.0
        %1026 = vadd.xlane.f32.xlu0 %v1025
        %v1027 = vpop.xlane.xlu0 %1026
        %v1028 = vrcp.pop %v1027
        %v1029 = vmul.f32 %v1027, %v1028
        %v1030 = vsub.f32 1.0, %v1029
        %v1031 = vmul.f32 %v1028, %v1030
        %v1032 = vadd.f32 %v1028, %v1031
        %vm1033 = vweird.f32 %v1027
        %vm1034 = vweird.f32 %v1028
        %vm1035 = vmor %vm1033, %vm1034
        %v1036 = vsel %vm1035, %v1028, %v1032
        %v1037 = vand.u32 2147483647, %v1027
        %vm1038 = vcmp.eq.f32.partialorder %v1037, 8.507059e+37
        %v1039 = vand.u32 %v1027, 2147483648
        %v1040 = vor.u32 1.1754944e-38, %v1039
        %v1041 = vsel %vm1038, %v1040, %v1036
        %v1042 = vmul.f32 %v1024, %v1041
        %v1043 = vpack.c.bf16 %v1042, %v1042
        %v1045 = vunpack.c.l.b16 %v913
        %v1046 = vpack.c.b16 %v1045, %v1045
        %1047 = vrot.lane.b32.xlu0 %v1046, 112
        %v1048 = vpop.permute.xlu0 %1047
        %v1050 = vsel %vm939, %v1043, 0
        %v1053 = vsel %vm968, %v1048, 0
        %1055 = vmatpush.bf16.msra.mxu0 0
        %1056 = vmatpush.bf16.msra.mxu0 0
        %1057 = vmatpush.bf16.msra.mxu0 0
        %1058 = vmatpush.bf16.msra.mxu0 0
        %1059 = vmatpush.bf16.msra.mxu0 0
        %1060 = vmatpush.bf16.msra.mxu0 0
        %1061 = vmatpush.bf16.msra.mxu0 0
        %1062 = vmatpush.bf16.msra.mxu0 %v1053
        %1063 = vmatmul.bf16.gmra.mxu0 %v1050
        %v1064 = vpop.f32.mrf.mxu0
        %v1065 = vadd.f32 0.0, %v1064
        %v1066 = vpop.f32.mrf.mxu0
        %1067 = vdwg.mxu0
        %v1068 = vpack.c.bf16 %v1065, %v1065
        %1070 = vrot.lane.b32.xlu0 %v1068, 16
        %v1071 = vpop.permute.xlu0 %1070
        %vm1073 = vcmask 257152
        %1074 = vst.msk [vmem:[#allocation3] sm:$0xf] %vm1073, %v1071
        %v1075 = vld [vmem:[#allocation3] sm:$0xf]
        %v1076 = vld [vmem:[%s560] sm:$0xf]
        %v1077 = vld [vmem:[%s560 + $0x4] sm:$0xf]
        %v1078 = vld [vmem:[%s560 + $0x8] sm:$0xf]
        %v1079 = vld [vmem:[%s560 + $0xc] sm:$0xf]
        %v1080 = vld [vmem:[%s560 + $0x10] sm:$0xf]
        %v1081 = vld [vmem:[%s560 + $0x14] sm:$0xf]
        %v1082 = vld [vmem:[%s560 + $0x18] sm:$0xf]
        %v1083 = vld [vmem:[%s560 + $0x1c] sm:$0xf]
        %v1084 = vld [vmem:[%s560 + $0x20] sm:$0xf]
        %v1085 = vld [vmem:[%s560 + $0x24] sm:$0xf]
        %v1086 = vld [vmem:[%s560 + $0x28] sm:$0xf]
        %v1087 = vld [vmem:[%s560 + $0x2c] sm:$0xf]
        %v1088 = vld [vmem:[%s560 + $0x30] sm:$0xf]
        %v1089 = vld [vmem:[%s560 + $0x34] sm:$0xf]
        %v1090 = vld [vmem:[%s560 + $0x38] sm:$0xf]
        %v1091 = vld [vmem:[%s560 + $0x3c] sm:$0xf]
        %v1092 = vperm.slane %v705, 1
        %v1109 = vunpack.c.l.b16 %v1076
        %v1110 = vunpack.c.l.b16 %v1077
        %v1111 = vunpack.c.l.b16 %v1078
        %v1112 = vunpack.c.l.b16 %v1079
        %v1113 = vunpack.c.l.b16 %v1080
        %v1114 = vunpack.c.l.b16 %v1081
        %v1115 = vunpack.c.l.b16 %v1082
        %v1116 = vunpack.c.l.b16 %v1083
        %v1117 = vunpack.c.l.b16 %v1084
        %v1118 = vunpack.c.l.b16 %v1085
        %v1119 = vunpack.c.l.b16 %v1086
        %v1120 = vunpack.c.l.b16 %v1087
        %v1121 = vunpack.c.l.b16 %v1088
        %v1122 = vunpack.c.l.b16 %v1089
        %v1123 = vunpack.c.l.b16 %v1090
        %v1124 = vunpack.c.l.b16 %v1091
        %v1125 = vpack.c.b16 %v1110, %v1109
        %v1126 = vpack.c.b16 %v1112, %v1111
        %v1127 = vpack.c.b16 %v1114, %v1113
        %v1128 = vpack.c.b16 %v1116, %v1115
        %v1129 = vpack.c.b16 %v1118, %v1117
        %v1130 = vpack.c.b16 %v1120, %v1119
        %v1131 = vpack.c.b16 %v1122, %v1121
        %v1132 = vpack.c.b16 %v1124, %v1123
        %1141 = vmatpush.bf16.msra.mxu0 %v1132
        %1142 = vmatpush.bf16.msra.mxu0 %v1131
        %1143 = vmatpush.bf16.msra.mxu0 %v1130
        %1144 = vmatpush.bf16.msra.mxu0 %v1129
        %1145 = vmatpush.bf16.msra.mxu0 %v1128
        %1146 = vmatpush.bf16.msra.mxu0 %v1127
        %1147 = vmatpush.bf16.msra.mxu0 %v1126
        %1148 = vmatpush.bf16.msra.mxu0 %v1125
        %1149 = vmatmul.bf16.gmra.mxu0 %v1075
        %v1150 = vpop.f32.mrf.mxu0
        %v1151 = vadd.f32 %v1092, %v1150
        %v1152 = vpop.f32.mrf.mxu0
        %1153 = vdwg.mxu0
        %v1154 = vadd.f32 %v1151, %v703
        %1155 = vadd.xlane.f32.xlu0 %v1154
        %v1156 = vpop.xlane.xlu0 %1155
        %v1157 = vmul.f32 %v1156, 0.03125
        %v1158 = vsub.f32 %v1154, %v1157
        %v1159 = vmul.f32 %v1158, %v1158
        %1160 = vadd.xlane.f32.xlu0 %v1159
        %v1161 = vpop.xlane.xlu0 %1160
        %v1162 = vmul.f32 %v1157, %v1157
        %v1163 = vmul.f32 %v1162, 96.0
        %v1164 = vsub.f32 %v1161, %v1163
        %v1165 = vmul.f32 %v1164, 0.03125
        %v1166 = vadd.f32 %v1165, 1e-12
        %v1167 = vrsqrt.pop %v1166
        %v1168 = vmul.f32 %v1167, %v1166
        %v1169 = vmul.f32 %v1168, %v1167
        %v1170 = vmul.f32 0.5, %v1169
        %v1171 = vsub.f32 1.5, %v1170
        %v1172 = vmul.f32 %v1167, %v1171
        %vm1173 = vweird.f32 %v1166
        %vm1174 = vweird.f32 %v1167
        %vm1175 = vmor %vm1173, %vm1174
        %v1176 = vsel %vm1175, %v1167, %v1172
        %v1177 = vmul.f32 %v1158, %v1176
        %v1178 = vperm.slane %v705, 2
        %v1179 = vmul.f32 %v1177, %v1178
        %v1180 = vperm.slane %v705, 3
        %v1181 = vadd.f32 %v1179, %v1180
        %v1182 = vpack.c.bf16 %v1181, %v1181
        %v1183 = vld [vmem:[%s570] sm:$0xf]
        %v1184 = vld [vmem:[%s570 + $0x4] sm:$0xf]
        %v1185 = vld [vmem:[%s570 + $0x8] sm:$0xf]
        %v1186 = vld [vmem:[%s570 + $0xc] sm:$0xf]
        %v1187 = vld [vmem:[%s570 + $0x10] sm:$0xf]
        %v1188 = vld [vmem:[%s570 + $0x14] sm:$0xf]
        %v1189 = vld [vmem:[%s570 + $0x18] sm:$0xf]
        %v1190 = vld [vmem:[%s570 + $0x1c] sm:$0xf]
        %v1191 = vld [vmem:[%s570 + $0x20] sm:$0xf]
        %v1192 = vld [vmem:[%s570 + $0x24] sm:$0xf]
        %v1193 = vld [vmem:[%s570 + $0x28] sm:$0xf]
        %v1194 = vld [vmem:[%s570 + $0x2c] sm:$0xf]
        %v1195 = vld [vmem:[%s570 + $0x30] sm:$0xf]
        %v1196 = vld [vmem:[%s570 + $0x34] sm:$0xf]
        %v1197 = vld [vmem:[%s570 + $0x38] sm:$0xf]
        %v1198 = vld [vmem:[%s570 + $0x3c] sm:$0xf]
        %v1199 = vperm.slane %v705, 4
        %v1216 = vunpack.c.l.b16 %v1183
        %v1217 = vunpack.c.l.b16 %v1184
        %v1218 = vunpack.c.l.b16 %v1185
        %v1219 = vunpack.c.l.b16 %v1186
        %v1220 = vunpack.c.l.b16 %v1187
        %v1221 = vunpack.c.l.b16 %v1188
        %v1222 = vunpack.c.l.b16 %v1189
        %v1223 = vunpack.c.l.b16 %v1190
        %v1224 = vunpack.c.l.b16 %v1191
        %v1225 = vunpack.c.l.b16 %v1192
        %v1226 = vunpack.c.l.b16 %v1193
        %v1227 = vunpack.c.l.b16 %v1194
        %v1228 = vunpack.c.l.b16 %v1195
        %v1229 = vunpack.c.l.b16 %v1196
        %v1230 = vunpack.c.l.b16 %v1197
        %v1231 = vunpack.c.l.b16 %v1198
        %v1232 = vpack.c.b16 %v1217, %v1216
        %v1233 = vpack.c.b16 %v1219, %v1218
        %v1234 = vpack.c.b16 %v1221, %v1220
        %v1235 = vpack.c.b16 %v1223, %v1222
        %v1236 = vpack.c.b16 %v1225, %v1224
        %v1237 = vpack.c.b16 %v1227, %v1226
        %v1238 = vpack.c.b16 %v1229, %v1228
        %v1239 = vpack.c.b16 %v1231, %v1230
        %1248 = vmatpush.bf16.msra.mxu0 %v1239
        %1249 = vmatpush.bf16.msra.mxu0 %v1238
        %1250 = vmatpush.bf16.msra.mxu0 %v1237
        %1251 = vmatpush.bf16.msra.mxu0 %v1236
        %1252 = vmatpush.bf16.msra.mxu0 %v1235
        %1253 = vmatpush.bf16.msra.mxu0 %v1234
        %1254 = vmatpush.bf16.msra.mxu0 %v1233
        %1255 = vmatpush.bf16.msra.mxu0 %v1232
        %1256 = vmatmul.bf16.gmra.mxu0 %v1182
        %v1257 = vpop.f32.mrf.mxu0
        %v1258 = vadd.f32 %v1199, %v1257
        %v1259 = vpop.f32.mrf.mxu0
        %1260 = vdwg.mxu0
        %v1261 = vmul.f32 %v1258, %v1258
        %v1262 = vmul.f32 %v1258, %v1261
        %v1263 = vmul.f32 %v1262, 0.044715
        %v1264 = vadd.f32 %v1258, %v1263
        %v1265 = vmul.f32 %v1264, 0.7978846
        %v1266 = vtanh.pop %v1265
        %v1267 = vadd.f32 %v1266, 1.0
        %v1268 = vmul.f32 %v1267, 0.5
        %v1269 = vmul.f32 %v1258, %v1268
        %v1270 = vpack.c.bf16 %v1269, %v1269
        %v1271 = vld [vmem:[%s580] sm:$0xf]
        %v1272 = vld [vmem:[%s580 + $0x4] sm:$0xf]
        %v1273 = vld [vmem:[%s580 + $0x8] sm:$0xf]
        %v1274 = vld [vmem:[%s580 + $0xc] sm:$0xf]
        %v1275 = vld [vmem:[%s580 + $0x10] sm:$0xf]
        %v1276 = vld [vmem:[%s580 + $0x14] sm:$0xf]
        %v1277 = vld [vmem:[%s580 + $0x18] sm:$0xf]
        %v1278 = vld [vmem:[%s580 + $0x1c] sm:$0xf]
        %v1279 = vld [vmem:[%s580 + $0x20] sm:$0xf]
        %v1280 = vld [vmem:[%s580 + $0x24] sm:$0xf]
        %v1281 = vld [vmem:[%s580 + $0x28] sm:$0xf]
        %v1282 = vld [vmem:[%s580 + $0x2c] sm:$0xf]
        %v1283 = vld [vmem:[%s580 + $0x30] sm:$0xf]
        %v1284 = vld [vmem:[%s580 + $0x34] sm:$0xf]
        %v1285 = vld [vmem:[%s580 + $0x38] sm:$0xf]
        %v1286 = vld [vmem:[%s580 + $0x3c] sm:$0xf]
        %v1287 = vperm.slane %v705, 5
        %v1304 = vunpack.c.l.b16 %v1271
        %v1305 = vunpack.c.l.b16 %v1272
        %v1306 = vunpack.c.l.b16 %v1273
        %v1307 = vunpack.c.l.b16 %v1274
        %v1308 = vunpack.c.l.b16 %v1275
        %v1309 = vunpack.c.l.b16 %v1276
        %v1310 = vunpack.c.l.b16 %v1277
        %v1311 = vunpack.c.l.b16 %v1278
        %v1312 = vunpack.c.l.b16 %v1279
        %v1313 = vunpack.c.l.b16 %v1280
        %v1314 = vunpack.c.l.b16 %v1281
        %v1315 = vunpack.c.l.b16 %v1282
        %v1316 = vunpack.c.l.b16 %v1283
        %v1317 = vunpack.c.l.b16 %v1284
        %v1318 = vunpack.c.l.b16 %v1285
        %v1319 = vunpack.c.l.b16 %v1286
        %v1320 = vpack.c.b16 %v1305, %v1304
        %v1321 = vpack.c.b16 %v1307, %v1306
        %v1322 = vpack.c.b16 %v1309, %v1308
        %v1323 = vpack.c.b16 %v1311, %v1310
        %v1324 = vpack.c.b16 %v1313, %v1312
        %v1325 = vpack.c.b16 %v1315, %v1314
        %v1326 = vpack.c.b16 %v1317, %v1316
        %v1327 = vpack.c.b16 %v1319, %v1318
        %1336 = vmatpush.bf16.msra.mxu0 %v1327
        %1337 = vmatpush.bf16.msra.mxu0 %v1326
        %1338 = vmatpush.bf16.msra.mxu0 %v1325
        %1339 = vmatpush.bf16.msra.mxu0 %v1324
        %1340 = vmatpush.bf16.msra.mxu0 %v1323
        %1341 = vmatpush.bf16.msra.mxu0 %v1322
        %1342 = vmatpush.bf16.msra.mxu0 %v1321
        %1343 = vmatpush.bf16.msra.mxu0 %v1320
        %1344 = vmatmul.bf16.gmra.mxu0 %v1270
        %v1345 = vpop.f32.mrf.mxu0
        %v1346 = vadd.f32 %v1287, %v1345
        %v1347 = vpop.f32.mrf.mxu0
        %1348 = vdwg.mxu0
        %v1349 = vadd.f32 %v1346, %v1181
        %1350 = vadd.xlane.f32.xlu0 %v1349
        %v1351 = vpop.xlane.xlu0 %1350
        %v1352 = vmul.f32 %v1351, 0.03125
        %v1353 = vsub.f32 %v1349, %v1352
        %v1354 = vmul.f32 %v1353, %v1353
        %1355 = vadd.xlane.f32.xlu0 %v1354
        %v1356 = vpop.xlane.xlu0 %1355
        %v1357 = vmul.f32 %v1352, %v1352
        %v1358 = vmul.f32 %v1357, 96.0
        %v1359 = vsub.f32 %v1356, %v1358
        %v1360 = vmul.f32 %v1359, 0.03125
        %v1361 = vadd.f32 %v1360, 1e-12
        %v1362 = vrsqrt.pop %v1361
        %v1363 = vmul.f32 %v1362, %v1361
        %v1364 = vmul.f32 %v1363, %v1362
        %v1365 = vmul.f32 0.5, %v1364
        %v1366 = vsub.f32 1.5, %v1365
        %v1367 = vmul.f32 %v1362, %v1366
        %vm1368 = vweird.f32 %v1361
        %vm1369 = vweird.f32 %v1362
        %vm1370 = vmor %vm1368, %vm1369
        %v1371 = vsel %vm1370, %v1362, %v1367
        %v1372 = vmul.f32 %v1353, %v1371
        %v1373 = vperm.slane %v705, 6
        %v1374 = vmul.f32 %v1372, %v1373
        %v1375 = vperm.slane %v705, 7
        %v1376 = vadd.f32 %v1374, %v1375
        %1377 = vst [vmem:[#allocation2] sm:$0xff] %v1376
        %p1378 = scmp.eq.s32.totalorder %s48, 1
        // Predicated region
        $region97: #{tpu_custom_call.1} parent=55 // pred_check
          %p1379 = pneg %p1378
        $region98: #{tpu_custom_call.1} parent=55 // pred_check_branch
          %1381 = sbr.rel (%p1379) target = $region100
        $region99: #{tpu_custom_call.1} parent=55 // pred_region
          %1382 = vst [vmem:[%s659] sm:$0xff] %v1376
          %v1383 = vpack.c.bf16 %v1376, %v1376
          %v1384 = vld [vmem:[#allocation18] sm:$0xf]
          %v1385 = vld [vmem:[#allocation18 + $0x4] sm:$0xf]
          %v1386 = vld [vmem:[#allocation18 + $0x8] sm:$0xf]
          %v1387 = vld [vmem:[#allocation18 + $0xc] sm:$0xf]
          %v1388 = vld [vmem:[#allocation18 + $0x10] sm:$0xf]
          %v1389 = vld [vmem:[#allocation18 + $0x14] sm:$0xf]
          %v1390 = vld [vmem:[#allocation18 + $0x18] sm:$0xf]
          %v1391 = vld [vmem:[#allocation18 + $0x1c] sm:$0xf]
          %v1392 = vld [vmem:[#allocation18 + $0x20] sm:$0xf]
          %v1393 = vld [vmem:[#allocation18 + $0x24] sm:$0xf]
          %v1394 = vld [vmem:[#allocation18 + $0x28] sm:$0xf]
          %v1395 = vld [vmem:[#allocation18 + $0x2c] sm:$0xf]
          %v1396 = vld [vmem:[#allocation18 + $0x30] sm:$0xf]
          %v1397 = vld [vmem:[#allocation18 + $0x34] sm:$0xf]
          %v1398 = vld [vmem:[#allocation18 + $0x38] sm:$0xf]
          %v1399 = vld [vmem:[#allocation18 + $0x3c] sm:$0xf]
          %v1400 = vld [vmem:[#allocation9 + $0x2] sm:$0x1]
          %v1401 = vperm.slane %v1400, 0
          %v1418 = vunpack.c.l.b16 %v1384
          %v1419 = vunpack.c.l.b16 %v1385
          %v1420 = vunpack.c.l.b16 %v1386
          %v1421 = vunpack.c.l.b16 %v1387
          %v1422 = vunpack.c.l.b16 %v1388
          %v1423 = vunpack.c.l.b16 %v1389
          %v1424 = vunpack.c.l.b16 %v1390
          %v1425 = vunpack.c.l.b16 %v1391
          %v1426 = vunpack.c.l.b16 %v1392
          %v1427 = vunpack.c.l.b16 %v1393
          %v1428 = vunpack.c.l.b16 %v1394
          %v1429 = vunpack.c.l.b16 %v1395
          %v1430 = vunpack.c.l.b16 %v1396
          %v1431 = vunpack.c.l.b16 %v1397
          %v1432 = vunpack.c.l.b16 %v1398
          %v1433 = vunpack.c.l.b16 %v1399
          %v1434 = vpack.c.b16 %v1419, %v1418
          %v1435 = vpack.c.b16 %v1421, %v1420
          %v1436 = vpack.c.b16 %v1423, %v1422
          %v1437 = vpack.c.b16 %v1425, %v1424
          %v1438 = vpack.c.b16 %v1427, %v1426
          %v1439 = vpack.c.b16 %v1429, %v1428
          %v1440 = vpack.c.b16 %v1431, %v1430
          %v1441 = vpack.c.b16 %v1433, %v1432
          %1450 = vmatpush.bf16.msra.mxu0 %v1441
          %1451 = vmatpush.bf16.msra.mxu0 %v1440
          %1452 = vmatpush.bf16.msra.mxu0 %v1439
          %1453 = vmatpush.bf16.msra.mxu0 %v1438
          %1454 = vmatpush.bf16.msra.mxu0 %v1437
          %1455 = vmatpush.bf16.msra.mxu0 %v1436
          %1456 = vmatpush.bf16.msra.mxu0 %v1435
          %1457 = vmatpush.bf16.msra.mxu0 %v1434
          %1458 = vmatmul.bf16.gmra.mxu0 %v1383
          %v1459 = vpop.f32.mrf.mxu0
          %v1460 = vadd.f32 %v1401, %v1459
          %v1461 = vpop.f32.mrf.mxu0
          %1462 = vdwg.mxu0
          %v1463 = vtanh.pop %v1460
          %1464 = vst [vmem:[%s665] sm:$0x1] %v1463
        $region100: #{tpu_custom_call.1} parent=55 // pred_fallthru
          _
        %s1465 = sand.u32 %s287, 1
        %s1466 = scalar_lea.sflag [#allocation6], %s1465
        %s1467 = sand.u32 %s287, 1
        %s1468 = smul.addr %s1467, 8
        %s1469 = scalar_lea.vmem [#allocation19], %s1468
        %s1470 = sand.u32 %s313, 1
        %s1471 = scalar_lea.sflag [#allocation21], %s1470
        %s1472 = sand.u32 %s313, 1
        %s1473 = scalar_lea.vmem [#allocation20], %s1472
        // Predicated region
        $region101: #{tpu_custom_call.1} parent=55 // pred_check
          %p1474 = pneg %p297
        $region102: #{tpu_custom_call.1} parent=55 // pred_check_branch
          %1476 = sbr.rel (%p1474) target = $region104
        $region103: #{tpu_custom_call.1} parent=55 // pred_region
          %1478 = vsyncadd %s1466, 0
          %s1479 = smul.addr %s47, 8
          %s1480 = scalar_lea.hbm %s9, %s1479
          %s1482 = sshll.u32 %s1469, 4
          %s1483 = int_to_ptr.vmem [resolvable:$true] %s1482
          %s1484 = sshll.u32 %s1480, 4
          %s1485 = int_to_ptr.hbm [resolvable:$true] %s1484
          %1487 = dma.vmem_to_hbm [thread:$0]  %s1483, 128, %s1485, %s1466
        $region104: #{tpu_custom_call.1} parent=55 // pred_fallthru
          _
        // Predicated region
        $region105: #{tpu_custom_call.1} parent=55 // pred_check
          %p1488 = pneg %p323
        $region106: #{tpu_custom_call.1} parent=55 // pred_check_branch
          %1490 = sbr.rel (%p1488) target = $region108
        $region107: #{tpu_custom_call.1} parent=55 // pred_region
          %1492 = vsyncadd %s1471, 0
          %s1493 = scalar_lea.hbm %s10, %s47
          %s1495 = sshll.u32 %s1473, 4
          %s1496 = int_to_ptr.vmem [resolvable:$true] %s1495
          %s1497 = sshll.u32 %s1493, 4
          %s1498 = int_to_ptr.hbm [resolvable:$true] %s1497
          %1500 = dma.vmem_to_hbm [thread:$0]  %s1496, 16, %s1498, %s1471
        $region108: #{tpu_custom_call.1} parent=55 // pred_fallthru
          _
      $region56: #{tpu_custom_call.1} parent=5 // pred_fallthru
        _
      %p1501 = scmp.le.s32.totalorder 2, %s38
      // Predicated region
      $region109: #{tpu_custom_call.1} parent=5 // pred_check
        %p1502 = pneg %p1501
      $region110: #{tpu_custom_call.1} parent=5 // pred_check_branch
        %1504 = sbr.rel (%p1502) target = $region112
      $region111: #{tpu_custom_call.1} parent=5 // pred_region
        %s1505 = ssub.s32 %s38, 2
        // Predicated region
        $region113: #{tpu_custom_call.1} parent=111 // pred_check
          %p1506 = pneg %p303
        $region114: #{tpu_custom_call.1} parent=111 // pred_check_branch
          %1508 = sbr.rel (%p1506) target = $region116
        $region115: #{tpu_custom_call.1} parent=111 // pred_region
          %s1509 = sand.u32 %s288, 1
          %s1510 = scalar_lea.sflag [#allocation6], %s1509
          %s1511 = sand.u32 %s288, 1
          %s1512 = smul.addr %s1511, 8
          %s1513 = scalar_lea.vmem [#allocation19], %s1512
          %1515 = dma.done %s1510, 128
        $region116: #{tpu_custom_call.1} parent=111 // pred_fallthru
          _
        // Predicated region
        $region117: #{tpu_custom_call.1} parent=111 // pred_check
          %p1516 = pneg %p329
        $region118: #{tpu_custom_call.1} parent=111 // pred_check_branch
          %1518 = sbr.rel (%p1516) target = $region120
        $region119: #{tpu_custom_call.1} parent=111 // pred_region
          %s1519 = sand.u32 %s314, 1
          %s1520 = scalar_lea.sflag [#allocation21], %s1519
          %s1521 = sand.u32 %s314, 1
          %s1522 = scalar_lea.vmem [#allocation20], %s1521
          %1524 = dma.done %s1520, 16
        $region120: #{tpu_custom_call.1} parent=111 // pred_fallthru
          _
      $region112: #{tpu_custom_call.1} parent=5 // pred_fallthru
        _
    $region6: #{tpu_custom_call.1} parent=1 // loop_footer
      %s42 = sadd.s32 1, %s38
    $region7: #{tpu_custom_call.1} parent=1 // loop_footer_branch
      %37 = sbr.rel target = $region3
    $region8: #{tpu_custom_call.1} parent=1 // loop_exit
      _
    %1525 = vsyncpa [#allocation5], 1
    %s1526 = scalar_lea.sflag [#allocation5], 1
    %1527 = vsyncpa %s1526, 1
    %1528 = vsyncpa [#allocation8], 1
    %s1529 = scalar_lea.sflag [#allocation8], 1
    %1530 = vsyncpa %s1529, 1
    %1531 = vsyncpa [#allocation11], 1
    %s1532 = scalar_lea.sflag [#allocation11], 1
    %1533 = vsyncpa %s1532, 1
    %1534 = vsyncpa [#allocation14], 1
    %s1535 = scalar_lea.sflag [#allocation14], 1
    %1536 = vsyncpa %s1535, 1
    %1537 = vsyncpa [#allocation17], 1
    %s1538 = scalar_lea.sflag [#allocation17], 1
    %1539 = vsyncpa %s1538, 1
    %1540 = vsyncpa [#allocation6], 1
    %s1541 = scalar_lea.sflag [#allocation6], 1
    %1542 = vsyncpa %s1541, 1
    %1543 = vsyncpa [#allocation21], 1
    %s1544 = scalar_lea.sflag [#allocation21], 1
    %1545 = vsyncpa %s1544, 1

</llo_original>
